<compile_context>
chip_gen: v5e
topology: v5e:2x2
jax: 0.10.0
libtpu: 0.0.40
codegen_flags: <defaults>
</compile_context>

<pallas_src>
import functools

import numpy as np
import jax
import jax.numpy as jnp
from jax import lax
from jax.experimental import pallas as pl
from jax.experimental.pallas import tpu as pltpu


# --------------------------------------------------------------------------
# Small helpers: pick tile sizes against a conservative VMEM budget.
# --------------------------------------------------------------------------
def _pick_lane_tile(HW, bytes_per_lane, budget=8 << 20, max_tile=8192):
    """Largest lane tile (multiple of 128 dividing HW, or full HW) within budget."""
    if HW <= max_tile and bytes_per_lane * HW <= budget:
        return HW                      # full-width block is always legal
    if HW % 128 != 0:
        return HW                      # can't tile cleanly; fall back to full width
    t = (min(max_tile, max(budget // bytes_per_lane, 128)) // 128) * 128
    t = max(t, 128)
    while HW % t:
        t -= 128
    return max(t, 128)


def _pick_batch_tile(B, bytes_per_image, budget=8 << 20, max_bt=8):
    """Largest Bt <= max_bt dividing B whose double-buffered bytes fit budget."""
    bt = min(B, max_bt)
    while bt > 1 and (B % bt or bytes_per_image * bt > budget):
        bt -= 1
    return max(bt, 1)


# --------------------------------------------------------------------------
# BandEst: two 1-D convs + folded BN + sigmoid * (gb_max - 1), one kernel.
# --------------------------------------------------------------------------
def _band_est_kernel(xv_ref, xh_ref, wv_ref, wh_ref, b_ref, o_ref, *,
                     C, L, H, W, Bt, out_scale):
    """Grid step = Bt images.

    xv_ref: (Bt, C, (H+2g)*W)  x zero-padded along H, (h,w)-flattened
    xh_ref: (Bt, C, (W+2g)*H)  x zero-padded along W, (w,h)-flattened
    wv_ref: (L, 2, C)          BN-folded vertical tap weights
    wh_ref: (L, 2, C)          BN-folded horizontal tap weights
    b_ref:  (4, 1)             BN-folded bias (vert rows 0-1, horz rows 2-3)
    o_ref:  (Bt, 4, HW)        rows 0-1 in (h,w) order, rows 2-3 in (w,h) order
    """
    HW = H * W
    for i in range(Bt):
        # Sum of L shifted-slice dots — no im2col scratch round-trip.
        acc_v = jnp.zeros((2, HW), jnp.float32)
        acc_h = jnp.zeros((2, HW), jnp.float32)
        for t in range(L):
            acc_v += jnp.dot(wv_ref[t], xv_ref[i, :, t * W:t * W + HW],
                             preferred_element_type=jnp.float32)
            acc_h += jnp.dot(wh_ref[t], xh_ref[i, :, t * H:t * H + HW],
                             preferred_element_type=jnp.float32)
        y = jnp.concatenate([acc_v, acc_h], axis=0) + b_ref[...]
        # sigmoid * (gb_max - 1): exp + approximate reciprocal both on the EUP slot.
        gb = out_scale * pl.reciprocal(1.0 + jnp.exp(-y), approx=True)
        o_ref[i] = gb.astype(o_ref.dtype)


def band_est_forward(x, p, *, gb_max, eps=1e-5, vmem_budget_bytes=8 << 20):
    B, C, H, W = x.shape
    L = 2 * gb_max + 1
    g = gb_max
    HW = H * W

    # Fold eval-mode BN into conv weights / bias.
    sv = p['gamma_v'] / jnp.sqrt(p['var_v'] + eps)
    sh = p['gamma_h'] / jnp.sqrt(p['var_h'] + eps)
    wv_f = p['wv'][:, :, :, 0] * sv[:, None, None]            # (2, C, L)
    wh_f = p['wh'][:, :, 0, :] * sh[:, None, None]            # (2, C, L)
    bv_f = p['beta_v'] + sv * (p['bv'] - p['mean_v'])         # (2,)
    bh_f = p['beta_h'] + sh * (p['bh'] - p['mean_h'])

    # Per-tap weight blocks (L, 2, C): wv_all[t] is loaded with no lane offsets.
    wv_all = jnp.transpose(wv_f, (2, 0, 1)).astype(jnp.float32)
    wh_all = jnp.transpose(wh_f, (2, 0, 1)).astype(jnp.float32)
    b_all = jnp.concatenate([bv_f, bh_f]).reshape(4, 1).astype(jnp.float32)

    # Zero-padded, lane-flattened views (every conv tap is a contiguous lane slice).
    xv = jnp.pad(x, ((0, 0), (0, 0), (g, g), (0, 0))).reshape(B, C, (H + 2 * g) * W)
    xh = jnp.pad(jnp.transpose(x, (0, 1, 3, 2)),
                 ((0, 0), (0, 0), (g, g), (0, 0))).reshape(B, C, (W + 2 * g) * H)

    # Batch-tile: several small images per grid step, bounded by a VMEM budget
    # safe under every generation's default scoped VMEM (v5e 16 MiB).
    bytes_per_image = 2 * 4 * (C * ((H + 2 * g) * W + (W + 2 * g) * H) + 4 * HW)
    Bt = _pick_batch_tile(B, bytes_per_image, budget=vmem_budget_bytes)

    kernel = functools.partial(_band_est_kernel, C=C, L=L, H=H, W=W, Bt=Bt,
                               out_scale=float(gb_max - 1))
    out = pl.pallas_call(
        kernel,
        out_shape=jax.ShapeDtypeStruct((B, 4, HW), jnp.float32),
        grid=(B // Bt,),
        in_specs=[
            pl.BlockSpec((Bt, C, (H + 2 * g) * W), lambda b: (b, 0, 0)),
            pl.BlockSpec((Bt, C, (W + 2 * g) * H), lambda b: (b, 0, 0)),
            pl.BlockSpec((L, 2, C), lambda b: (0, 0, 0)),
            pl.BlockSpec((L, 2, C), lambda b: (0, 0, 0)),
            pl.BlockSpec((4, 1), lambda b: (0, 0)),
        ],
        out_specs=pl.BlockSpec((Bt, 4, HW), lambda b: (b, 0, 0)),
        compiler_params=pltpu.CompilerParams(dimension_semantics=("parallel",)),
        cost_estimate=pl.CostEstimate(
            flops=2 * B * 4 * (L * C) * HW,
            transcendentals=2 * B * 4 * HW,
            bytes_accessed=4 * (xv.size + xh.size + wv_all.size + wh_all.size +
                                b_all.size + B * 4 * HW)),
    )(xv, xh, wv_all, wh_all, b_all)

    gb_v = out[:, 0:2, :].reshape(B, 2, H, W)
    gb_h = out[:, 2:4, :].reshape(B, 2, W, H).transpose(0, 1, 3, 2)
    return jnp.concatenate([gb_v, gb_h], axis=1)              # (B, 4, H, W)


# --------------------------------------------------------------------------
# Sampling index / interpolation-weight math (mirrors the PyTorch code).
# --------------------------------------------------------------------------
def _gen_prf_grid(rb, gb):
    h_t, w_l = -(rb + gb[0]), -(rb + gb[1])
    h_d, w_r = rb + gb[0], rb + gb[1]
    w_prf = (rb + gb[1]) * 2 + 1
    h_prf = (rb + gb[0]) * 2 + 1
    px, py = np.meshgrid(np.arange(h_t, h_d + 1), np.arange(w_l, w_r + 1),
                         indexing='ij')

    def strips(a):
        t = a[0:rb, 0:w_prf - rb]
        r = a[0:h_prf - rb, w_prf - rb:w_prf]
        d = a[h_prf - rb:h_prf, rb:w_prf]
        l = a[rb:h_prf, 0:rb]
        return np.concatenate([t.ravel(), r.ravel(), d.ravel(), l.ravel()])

    return strips(px).astype(np.float32), strips(py).astype(np.float32)


def _sampling_indices(gb_mask, *, rb, H, W, Hp, Wp, prf_x, prf_y):
    """p_r + learned guard-band moves -> floor / clamp -> (indices, g weights)."""
    N = prf_x.shape[0]
    q = N // 4
    pad = 1 + rb
    gb0, gb1, gb2, gb3 = (gb_mask[:, 0], gb_mask[:, 1], gb_mask[:, 2], gb_mask[:, 3])
    zeros = jnp.zeros_like(gb0)
    mvx = jnp.stack([-gb0] * q + [zeros] * q + [gb1] * q + [zeros] * q, axis=-1)
    mvy = jnp.stack([zeros] * q + [gb3] * q + [zeros] * q + [-gb2] * q, axis=-1)
    base_x = (pad + jnp.arange(H, dtype=jnp.float32))[:, None] + prf_x[None, :]
    base_y = (pad + jnp.arange(W, dtype=jnp.float32))[:, None] + prf_y[None, :]
    p_x = base_x[None, :, None, :] + mvx                      # (B, H, W, N)
    p_y = base_y[None, None, :, :] + mvy
    q_lt_x = jnp.floor(p_x)
    q_lt_y = jnp.floor(p_y)
    q_rb_x = q_lt_x + 1.0
    q_rb_y = q_lt_y + 1.0
    q_lt_x = jnp.clip(q_lt_x, 0, Hp - 1)
    q_lt_y = jnp.clip(q_lt_y, 0, Wp - 1)
    q_rb_x = jnp.clip(q_rb_x, 0, Hp - 1)
    q_rb_y = jnp.clip(q_rb_y, 0, Wp - 1)
    p_x = jnp.clip(p_x, 0, Hp - 1)
    p_y = jnp.clip(p_y, 0, Wp - 1)
    g_lt = (1.0 + (q_lt_x - p_x)) * (1.0 + (q_lt_y - p_y))
    g_rb = (1.0 - (q_rb_x - p_x)) * (1.0 - (q_rb_y - p_y))
    idx_lt = q_lt_x.astype(jnp.int32) * Wp + q_lt_y.astype(jnp.int32)
    idx_rb = q_rb_x.astype(jnp.int32) * Wp + q_rb_y.astype(jnp.int32)
    return idx_lt, idx_rb, g_lt, g_rb


# --------------------------------------------------------------------------
# Fused (center term + pre-combined diagonal term) peak-conv kernel.
# --------------------------------------------------------------------------
def _peak_conv_kernel(x_ref, xr_ref, wc_ref, wd_ref, b_ref, o_ref):
    """Grid step = one image x one lane tile.

    x_ref:  (1, C, T)        center samples (== x)           f32
    xr_ref: (1, C*N, T)      pre-combined g_lt*x_lt+g_rb*x_rb (bf16 or f32)
    wc_ref: (out_ch, C)      sum_n W  (folded center weights) f32
    wd_ref: (out_ch, C*N)    -W                               (bf16 or f32)
    b_ref:  (out_ch, 1)      f32
    o_ref:  (1, out_ch, T)   lane-dense, NCHW-compatible
    """
    acc = jnp.dot(wc_ref[...], x_ref[0], preferred_element_type=jnp.float32)
    acc = acc + jnp.dot(wd_ref[...], xr_ref[0], preferred_element_type=jnp.float32)
    o_ref[0] = (acc + b_ref[...]).astype(o_ref.dtype)


def adapeak_sample_conv(x, gb_mask, peak_w, peak_b, *, refer_band,
                        use_bf16=True, vmem_budget_bytes=8 << 20):
    B, C, H, W = x.shape
    rb = refer_band
    k_h, k_w = 2 + 2 * rb, 4
    N = k_h * k_w
    pad = 1 + rb
    HW = H * W
    Hp, Wp = H + 2 * pad, W + 2 * pad
    out_ch = peak_w.shape[0]

    prf_x, prf_y = _gen_prf_grid(rb, (1, 1))
    assert prf_x.shape[0] == N, "AdaPeakConv2D ring/kernel sizes require refer_band == 1"
    idx_lt, idx_rb, g_lt, g_rb = _sampling_indices(
        gb_mask, rb=rb, H=H, W=W, Hp=Hp, Wp=Wp,
        prf_x=jnp.asarray(prf_x), prf_y=jnp.asarray(prf_y))

    # TODO(synk): the data-dependent 2-D corner gather has no clean Pallas TPU
    # primitive; it stays as an XLA gather.  The bilinear combine is done here so
    # XLA fuses it with the gather and the kernel DMAs a single x_r operand.
    x_pad = jnp.pad(x, ((0, 0), (0, 0), (pad, pad), (pad, pad)), mode='edge')
    x_pad_flat = x_pad.reshape(B, C, Hp * Wp)

    def gather(idx):
        flat = jnp.broadcast_to(idx.reshape(B, 1, HW * N), (B, C, HW * N))
        return jnp.take_along_axis(x_pad_flat, flat, axis=2).reshape(B, C, HW, N)

    x_lt = gather(idx_lt)
    x_rb = gather(idx_rb)
    x_r = (g_lt.reshape(B, 1, HW, N) * x_lt +
           g_rb.reshape(B, 1, HW, N) * x_rb)                  # f32 combine
    x_r = jnp.transpose(x_r, (0, 1, 3, 2)).reshape(B, C * N, HW)  # row = c*N + n

    xr_dtype = jnp.bfloat16 if use_bf16 else jnp.float32
    xr_bytes = np.dtype(xr_dtype).itemsize
    x_r = x_r.astype(xr_dtype)

    # Center samples: floor(p_c) lands exactly on the original pixels of x.
    x_flat = x.reshape(B, C, HW)

    # Peak conv weights: fold the (n-independent) center term into a summed weight;
    # keep center/diff as two blocks so the kernel does two accumulated dots
    # (no operand concat copy).
    w_flat = peak_w.reshape(out_ch, C * N).astype(jnp.float32)   # n = r*k_w + j order
    w_center = w_flat.reshape(out_ch, C, N).sum(axis=2)          # (out_ch, C) f32
    w_diff = (-w_flat).astype(xr_dtype)                          # (out_ch, C*N)
    b_col = peak_b.reshape(out_ch, 1).astype(jnp.float32)

    # Lane-tile grid axis: keep the double-buffered per-step working set within a
    # budget safe for all generations (v5e 16 MiB default scoped, v7x 64 MiB phys).
    bytes_per_lane = 2 * (C * 4 + C * N * xr_bytes + out_ch * x.dtype.itemsize)
    T = _pick_lane_tile(HW, bytes_per_lane, budget=vmem_budget_bytes)
    n_tiles = HW // T

    out = pl.pallas_call(
        _peak_conv_kernel,
        out_shape=jax.ShapeDtypeStruct((B, out_ch, HW), x.dtype),
        grid=(B, n_tiles),
        in_specs=[
            pl.BlockSpec((1, C, T), lambda b, j: (b, 0, j)),
            pl.BlockSpec((1, C * N, T), lambda b, j: (b, 0, j)),
            pl.BlockSpec((out_ch, C), lambda b, j: (0, 0)),
            pl.BlockSpec((out_ch, C * N), lambda b, j: (0, 0)),
            pl.BlockSpec((out_ch, 1), lambda b, j: (0, 0)),
        ],
        out_specs=pl.BlockSpec((1, out_ch, T), lambda b, j: (b, 0, j)),
        compiler_params=pltpu.CompilerParams(
            dimension_semantics=("parallel", "parallel")),
        cost_estimate=pl.CostEstimate(
            flops=2 * B * out_ch * (C + C * N) * HW,
            transcendentals=0,
            bytes_accessed=(4 * x_flat.size + xr_bytes * x_r.size +
                            4 * w_center.size + xr_bytes * w_diff.size +
                            4 * b_col.size + x.dtype.itemsize * B * out_ch * HW)),
    )(x_flat, x_r, w_center, w_diff, b_col)

    return out.reshape(B, out_ch, H, W)                       # NCHW, no transpose


def adapeak_forward(x, bandest_params, peak_w, peak_b, *, refer_band, gb_max,
                    use_bf16=True):
    gb_mask = band_est_forward(x, bandest_params, gb_max=gb_max)
    return adapeak_sample_conv(x, gb_mask, peak_w, peak_b, refer_band=refer_band,
                               use_bf16=use_bf16)


# --------------------------------------------------------------------------
# Pure-JAX references (torch-faithful) for correctness checking.
# --------------------------------------------------------------------------
def _band_est_reference(x, p, *, gb_max, eps=1e-5):
    def bn(y, gamma, beta, mean, var):
        s = (gamma / jnp.sqrt(var + eps))[None, :, None, None]
        return (y - mean[None, :, None, None]) * s + beta[None, :, None, None]

    yv = lax.conv_general_dilated(
        x, p['wv'], (1, 1), ((gb_max, gb_max), (0, 0)),
        dimension_numbers=('NCHW', 'OIHW', 'NCHW'),
        precision=lax.Precision.HIGHEST) + p['bv'][None, :, None, None]
    yh = lax.conv_general_dilated(
        x, p['wh'], (1, 1), ((0, 0), (gb_max, gb_max)),
        dimension_numbers=('NCHW', 'OIHW', 'NCHW'),
        precision=lax.Precision.HIGHEST) + p['bh'][None, :, None, None]
    gv = jax.nn.sigmoid(bn(yv, p['gamma_v'], p['beta_v'], p['mean_v'], p['var_v']))
    gh = jax.nn.sigmoid(bn(yh, p['gamma_h'], p['beta_h'], p['mean_h'], p['var_h']))
    return jnp.concatenate([gv * (gb_max - 1), gh * (gb_max - 1)], axis=1)


def _adapeak_sample_conv_reference(x, gb_mask, peak_w, peak_b, *, refer_band):
    """Literal path: explicit gathers, _reshape_x_prf, strided peak conv."""
    B, C, H, W = x.shape
    rb = refer_band
    k_h, k_w = 2 + 2 * rb, 4
    N = k_h * k_w
    pad = 1 + rb
    Hp, Wp = H + 2 * pad, W + 2 * pad
    x_pad = jnp.pad(x, ((0, 0), (0, 0), (pad, pad), (pad, pad)), mode='edge')
    x_pad_flat = x_pad.reshape(B, C, Hp * Wp)

    prf_x, prf_y = _gen_prf_grid(rb, (1, 1))
    idx_lt, idx_rb, g_lt, g_rb = _sampling_indices(
        gb_mask, rb=rb, H=H, W=W, Hp=Hp, Wp=Wp,
        prf_x=jnp.asarray(prf_x), prf_y=jnp.asarray(prf_y))

    def sample(idx):
        flat = jnp.broadcast_to(idx.reshape(B, 1, H * W * N), (B, C, H * W * N))
        return jnp.take_along_axis(x_pad_flat, flat, axis=2).reshape(B, C, H, W, N)

    c_row = pad + jnp.arange(H, dtype=jnp.int32)
    c_col = pad + jnp.arange(W, dtype=jnp.int32)
    idx_c = (c_row[:, None] * Wp + c_col[None, :])[None, :, :, None]
    idx_c = jnp.broadcast_to(idx_c, (B, H, W, N)).astype(jnp.int32)

    x_c = sample(idx_c)
    x_q_lt = sample(idx_lt)
    x_q_rb = sample(idx_rb)
    x_r = g_lt[:, None] * x_q_lt + g_rb[:, None] * x_q_rb
    x_prf = x_c - x_r                                         # (B, C, H, W, N)

    chunks = [x_prf[..., s:s + k_w].reshape(B, C, H, W * k_w) for s in range(0, N, k_w)]
    xs = jnp.concatenate(chunks, axis=-1).reshape(B, C, H * k_h, W * k_w)
    out = lax.conv_general_dilated(
        xs, peak_w, (k_h, k_w), 'VALID',
        dimension_numbers=('NCHW', 'OIHW', 'NCHW'),
        precision=lax.Precision.HIGHEST)
    return out + peak_b[None, :, None, None]


# --------------------------------------------------------------------------
if __name__ == "__main__":
    B, C, H, W = 2, 4, 16, 16
    out_ch = 8
    refer_band = 1            # ring layout + kernel size are only consistent for rb=1
    gb_max = 3
    L = 2 * gb_max + 1
    k_h, k_w = 2 + 2 * refer_band, 4

    key = jax.random.PRNGKey(0)
    ks = jax.random.split(key, 16)
    x = jax.random.normal(ks[0], (B, C, H, W), jnp.float32)

    # BandEst params (the torch module zero-inits these conv weights; random
    # values here exercise the general path -- forward semantics are identical).
    bandest_params = {
        'wv': 0.2 * jax.random.normal(ks[1], (2, C, L, 1), jnp.float32),
        'bv': 0.1 * jax.random.normal(ks[2], (2,), jnp.float32),
        'wh': 0.2 * jax.random.normal(ks[3], (2, C, 1, L), jnp.float32),
        'bh': 0.1 * jax.random.normal(ks[4], (2,), jnp.float32),
        'gamma_v': 1.0 + 0.1 * jax.random.normal(ks[5], (2,), jnp.float32),
        'beta_v': 0.1 * jax.random.normal(ks[6], (2,), jnp.float32),
        'mean_v': 0.1 * jax.random.normal(ks[7], (2,), jnp.float32),
        'var_v': 1.0 + 0.1 * jnp.abs(jax.random.normal(ks[8], (2,), jnp.float32)),
        'gamma_h': 1.0 + 0.1 * jax.random.normal(ks[9], (2,), jnp.float32),
        'beta_h': 0.1 * jax.random.normal(ks[10], (2,), jnp.float32),
        'mean_h': 0.1 * jax.random.normal(ks[11], (2,), jnp.float32),
        'var_h': 1.0 + 0.1 * jnp.abs(jax.random.normal(ks[12], (2,), jnp.float32)),
    }
    peak_w = 0.1 * jax.random.normal(ks[13], (out_ch, C, k_h, k_w), jnp.float32)
    peak_b = 0.1 * jax.random.normal(ks[14], (out_ch,), jnp.float32)

    # 1) BandEst kernel vs XLA-conv reference.  Tolerance loosened vs pure-f32
    #    because the sigmoid epilogue uses the EUP approximate reciprocal
    #    (pl.reciprocal(approx=True)); gb_mask range is [0, gb_max-1] = [0, 2].
    gb_k = jax.block_until_ready(band_est_forward(x, bandest_params, gb_max=gb_max))
    gb_r = _band_est_reference(x, bandest_params, gb_max=gb_max)
    assert gb_k.shape == (B, 4, H, W), gb_k.shape
    assert jnp.allclose(gb_k, gb_r, atol=1e-2, rtol=1e-2), \
        float(jnp.max(jnp.abs(gb_k - gb_r)))

    # Both paths below use the same gb_mask so the discrete floor/clamp decisions
    # in the sampling-index math match exactly.
    out_r = _adapeak_sample_conv_reference(x, gb_k, peak_w, peak_b,
                                           refer_band=refer_band)

    # 2a) Peak-conv kernel, f32 operand path: tight check of the kernel plumbing.
    out_f32 = jax.block_until_ready(
        adapeak_sample_conv(x, gb_k, peak_w, peak_b, refer_band=refer_band,
                            use_bf16=False))
    assert out_f32.shape == (B, out_ch, H, W), out_f32.shape
    assert jnp.allclose(out_f32, out_r, atol=5e-4, rtol=5e-4), \
        float(jnp.max(jnp.abs(out_f32 - out_r)))

    # 2b) Default bf16 path for the gathered x_r stream and diff weights (halves
    #     the dominant DMA bytes); looser tolerance for the bf16 quantization.
    out_bf = jax.block_until_ready(
        adapeak_sample_conv(x, gb_k, peak_w, peak_b, refer_band=refer_band,
                            use_bf16=True))
    assert jnp.allclose(out_bf, out_r, atol=3e-2, rtol=3e-2), \
        float(jnp.max(jnp.abs(out_bf - out_r)))

    # 3) Full fused forward (BandEst kernel -> index math -> peak-conv kernel).
    full = jax.block_until_ready(
        adapeak_forward(x, bandest_params, peak_w, peak_b,
                        refer_band=refer_band, gb_max=gb_max))
    assert full.shape == (B, out_ch, H, W), full.shape

    print("KERNEL_OK")
</pallas_src>

<mosaic_0001>
module attributes {stable_mosaic.version = 11 : i64} {
  func.func @_band_est_kernel(%arg0: i32, %arg1: memref<2x4x352xf32, #tpu.memory_space<vmem>>, %arg2: memref<2x4x352xf32, #tpu.memory_space<vmem>>, %arg3: memref<7x2x4xf32, #tpu.memory_space<vmem>>, %arg4: memref<7x2x4xf32, #tpu.memory_space<vmem>>, %arg5: memref<4x1xf32, #tpu.memory_space<vmem>>, %arg6: memref<2x4x256xf32, #tpu.memory_space<vmem>>) attributes {dimension_semantics = [#tpu.dimension_semantics<parallel>], iteration_bounds = array<i64: 1>, scalar_prefetch = 0 : i64, scratch_operands = 0 : i64, tpu.core_type = #tpu.core_type<tc>, window_params = [{transform_indices = @transform_0, window_bounds = array<i64: 2, 4, 352>}, {transform_indices = @transform_1, window_bounds = array<i64: 2, 4, 352>}, {pipeline_mode = #tpu.pipeline_mode<synchronous>, transform_indices = @transform_2, window_bounds = array<i64: 7, 2, 4>}, {pipeline_mode = #tpu.pipeline_mode<synchronous>, transform_indices = @transform_3, window_bounds = array<i64: 7, 2, 4>}, {pipeline_mode = #tpu.pipeline_mode<synchronous>, transform_indices = @transform_4, window_bounds = array<i64: 4, 1>}, {transform_indices = @transform_5, window_bounds = array<i64: 2, 4, 256>}]} {
    %cst = arith.constant 0.000000e+00 : f32
    %0 = vector.broadcast %cst : f32 to vector<2x256xf32>
    %cst_0 = arith.constant 0.000000e+00 : f32
    %1 = vector.broadcast %cst_0 : f32 to vector<2x256xf32>
    %c0 = arith.constant 0 : index
    %c0_1 = arith.constant 0 : index
    %c0_2 = arith.constant 0 : index
    %2 = vector.load %arg3[%c0, %c0_1, %c0_2] : memref<7x2x4xf32, #tpu.memory_space<vmem>>, vector<1x2x4xf32>
    %3 = vector.shape_cast %2 : vector<1x2x4xf32> to vector<2x4xf32>
    %c0_3 = arith.constant 0 : index
    %c0_4 = arith.constant 0 : index
    %c0_5 = arith.constant 0 : index
    %4 = vector.load %arg1[%c0_3, %c0_4, %c0_5] : memref<2x4x352xf32, #tpu.memory_space<vmem>>, vector<1x4x256xf32>
    %5 = vector.shape_cast %4 : vector<1x4x256xf32> to vector<4x256xf32>
    %cst_6 = arith.constant dense<0.000000e+00> : vector<2x256xf32>
    %6 = tpu.matmul %3, %5, %cst_6 {dimension_numbers = #tpu.dot_dimension_numbers<[1], [0], [0], [1], [0, 0, 1, 1], [], []>} : vector<2x4xf32>, vector<4x256xf32>, vector<2x256xf32> -> vector<2x256xf32>
    %7 = arith.addf %0, %6 : vector<2x256xf32>
    %c0_7 = arith.constant 0 : index
    %c0_8 = arith.constant 0 : index
    %c0_9 = arith.constant 0 : index
    %8 = vector.load %arg4[%c0_7, %c0_8, %c0_9] : memref<7x2x4xf32, #tpu.memory_space<vmem>>, vector<1x2x4xf32>
    %9 = vector.shape_cast %8 : vector<1x2x4xf32> to vector<2x4xf32>
    %c0_10 = arith.constant 0 : index
    %c0_11 = arith.constant 0 : index
    %c0_12 = arith.constant 0 : index
    %10 = vector.load %arg2[%c0_10, %c0_11, %c0_12] : memref<2x4x352xf32, #tpu.memory_space<vmem>>, vector<1x4x256xf32>
    %11 = vector.shape_cast %10 : vector<1x4x256xf32> to vector<4x256xf32>
    %cst_13 = arith.constant dense<0.000000e+00> : vector<2x256xf32>
    %12 = tpu.matmul %9, %11, %cst_13 {dimension_numbers = #tpu.dot_dimension_numbers<[1], [0], [0], [1], [0, 0, 1, 1], [], []>} : vector<2x4xf32>, vector<4x256xf32>, vector<2x256xf32> -> vector<2x256xf32>
    %13 = arith.addf %1, %12 : vector<2x256xf32>
    %c1 = arith.constant 1 : index
    %c0_14 = arith.constant 0 : index
    %c0_15 = arith.constant 0 : index
    %14 = vector.load %arg3[%c1, %c0_14, %c0_15] : memref<7x2x4xf32, #tpu.memory_space<vmem>>, vector<1x2x4xf32>
    %15 = vector.shape_cast %14 : vector<1x2x4xf32> to vector<2x4xf32>
    %c0_16 = arith.constant 0 : index
    %c0_17 = arith.constant 0 : index
    %c16 = arith.constant 16 : index
    %16 = vector.load %arg1[%c0_16, %c0_17, %c16] : memref<2x4x352xf32, #tpu.memory_space<vmem>>, vector<1x4x256xf32>
    %17 = vector.shape_cast %16 : vector<1x4x256xf32> to vector<4x256xf32>
    %cst_18 = arith.constant dense<0.000000e+00> : vector<2x256xf32>
    %18 = tpu.matmul %15, %17, %cst_18 {dimension_numbers = #tpu.dot_dimension_numbers<[1], [0], [0], [1], [0, 0, 1, 1], [], []>} : vector<2x4xf32>, vector<4x256xf32>, vector<2x256xf32> -> vector<2x256xf32>
    %19 = arith.addf %7, %18 : vector<2x256xf32>
    %c1_19 = arith.constant 1 : index
    %c0_20 = arith.constant 0 : index
    %c0_21 = arith.constant 0 : index
    %20 = vector.load %arg4[%c1_19, %c0_20, %c0_21] : memref<7x2x4xf32, #tpu.memory_space<vmem>>, vector<1x2x4xf32>
    %21 = vector.shape_cast %20 : vector<1x2x4xf32> to vector<2x4xf32>
    %c0_22 = arith.constant 0 : index
    %c0_23 = arith.constant 0 : index
    %c16_24 = arith.constant 16 : index
    %22 = vector.load %arg2[%c0_22, %c0_23, %c16_24] : memref<2x4x352xf32, #tpu.memory_space<vmem>>, vector<1x4x256xf32>
    %23 = vector.shape_cast %22 : vector<1x4x256xf32> to vector<4x256xf32>
    %cst_25 = arith.constant dense<0.000000e+00> : vector<2x256xf32>
    %24 = tpu.matmul %21, %23, %cst_25 {dimension_numbers = #tpu.dot_dimension_numbers<[1], [0], [0], [1], [0, 0, 1, 1], [], []>} : vector<2x4xf32>, vector<4x256xf32>, vector<2x256xf32> -> vector<2x256xf32>
    %25 = arith.addf %13, %24 : vector<2x256xf32>
    %c2 = arith.constant 2 : index
    %c0_26 = arith.constant 0 : index
    %c0_27 = arith.constant 0 : index
    %26 = vector.load %arg3[%c2, %c0_26, %c0_27] : memref<7x2x4xf32, #tpu.memory_space<vmem>>, vector<1x2x4xf32>
    %27 = vector.shape_cast %26 : vector<1x2x4xf32> to vector<2x4xf32>
    %c0_28 = arith.constant 0 : index
    %c0_29 = arith.constant 0 : index
    %c32 = arith.constant 32 : index
    %28 = vector.load %arg1[%c0_28, %c0_29, %c32] : memref<2x4x352xf32, #tpu.memory_space<vmem>>, vector<1x4x256xf32>
    %29 = vector.shape_cast %28 : vector<1x4x256xf32> to vector<4x256xf32>
    %cst_30 = arith.constant dense<0.000000e+00> : vector<2x256xf32>
    %30 = tpu.matmul %27, %29, %cst_30 {dimension_numbers = #tpu.dot_dimension_numbers<[1], [0], [0], [1], [0, 0, 1, 1], [], []>} : vector<2x4xf32>, vector<4x256xf32>, vector<2x256xf32> -> vector<2x256xf32>
    %31 = arith.addf %19, %30 : vector<2x256xf32>
    %c2_31 = arith.constant 2 : index
    %c0_32 = arith.constant 0 : index
    %c0_33 = arith.constant 0 : index
    %32 = vector.load %arg4[%c2_31, %c0_32, %c0_33] : memref<7x2x4xf32, #tpu.memory_space<vmem>>, vector<1x2x4xf32>
    %33 = vector.shape_cast %32 : vector<1x2x4xf32> to vector<2x4xf32>
    %c0_34 = arith.constant 0 : index
    %c0_35 = arith.constant 0 : index
    %c32_36 = arith.constant 32 : index
    %34 = vector.load %arg2[%c0_34, %c0_35, %c32_36] : memref<2x4x352xf32, #tpu.memory_space<vmem>>, vector<1x4x256xf32>
    %35 = vector.shape_cast %34 : vector<1x4x256xf32> to vector<4x256xf32>
    %cst_37 = arith.constant dense<0.000000e+00> : vector<2x256xf32>
    %36 = tpu.matmul %33, %35, %cst_37 {dimension_numbers = #tpu.dot_dimension_numbers<[1], [0], [0], [1], [0, 0, 1, 1], [], []>} : vector<2x4xf32>, vector<4x256xf32>, vector<2x256xf32> -> vector<2x256xf32>
    %37 = arith.addf %25, %36 : vector<2x256xf32>
    %c3 = arith.constant 3 : index
    %c0_38 = arith.constant 0 : index
    %c0_39 = arith.constant 0 : index
    %38 = vector.load %arg3[%c3, %c0_38, %c0_39] : memref<7x2x4xf32, #tpu.memory_space<vmem>>, vector<1x2x4xf32>
    %39 = vector.shape_cast %38 : vector<1x2x4xf32> to vector<2x4xf32>
    %c0_40 = arith.constant 0 : index
    %c0_41 = arith.constant 0 : index
    %c48 = arith.constant 48 : index
    %40 = vector.load %arg1[%c0_40, %c0_41, %c48] : memref<2x4x352xf32, #tpu.memory_space<vmem>>, vector<1x4x256xf32>
    %41 = vector.shape_cast %40 : vector<1x4x256xf32> to vector<4x256xf32>
    %cst_42 = arith.constant dense<0.000000e+00> : vector<2x256xf32>
    %42 = tpu.matmul %39, %41, %cst_42 {dimension_numbers = #tpu.dot_dimension_numbers<[1], [0], [0], [1], [0, 0, 1, 1], [], []>} : vector<2x4xf32>, vector<4x256xf32>, vector<2x256xf32> -> vector<2x256xf32>
    %43 = arith.addf %31, %42 : vector<2x256xf32>
    %c3_43 = arith.constant 3 : index
    %c0_44 = arith.constant 0 : index
    %c0_45 = arith.constant 0 : index
    %44 = vector.load %arg4[%c3_43, %c0_44, %c0_45] : memref<7x2x4xf32, #tpu.memory_space<vmem>>, vector<1x2x4xf32>
    %45 = vector.shape_cast %44 : vector<1x2x4xf32> to vector<2x4xf32>
    %c0_46 = arith.constant 0 : index
    %c0_47 = arith.constant 0 : index
    %c48_48 = arith.constant 48 : index
    %46 = vector.load %arg2[%c0_46, %c0_47, %c48_48] : memref<2x4x352xf32, #tpu.memory_space<vmem>>, vector<1x4x256xf32>
    %47 = vector.shape_cast %46 : vector<1x4x256xf32> to vector<4x256xf32>
    %cst_49 = arith.constant dense<0.000000e+00> : vector<2x256xf32>
    %48 = tpu.matmul %45, %47, %cst_49 {dimension_numbers = #tpu.dot_dimension_numbers<[1], [0], [0], [1], [0, 0, 1, 1], [], []>} : vector<2x4xf32>, vector<4x256xf32>, vector<2x256xf32> -> vector<2x256xf32>
    %49 = arith.addf %37, %48 : vector<2x256xf32>
    %c4 = arith.constant 4 : index
    %c0_50 = arith.constant 0 : index
    %c0_51 = arith.constant 0 : index
    %50 = vector.load %arg3[%c4, %c0_50, %c0_51] : memref<7x2x4xf32, #tpu.memory_space<vmem>>, vector<1x2x4xf32>
    %51 = vector.shape_cast %50 : vector<1x2x4xf32> to vector<2x4xf32>
    %c0_52 = arith.constant 0 : index
    %c0_53 = arith.constant 0 : index
    %c64 = arith.constant 64 : index
    %52 = vector.load %arg1[%c0_52, %c0_53, %c64] : memref<2x4x352xf32, #tpu.memory_space<vmem>>, vector<1x4x256xf32>
    %53 = vector.shape_cast %52 : vector<1x4x256xf32> to vector<4x256xf32>
    %cst_54 = arith.constant dense<0.000000e+00> : vector<2x256xf32>
    %54 = tpu.matmul %51, %53, %cst_54 {dimension_numbers = #tpu.dot_dimension_numbers<[1], [0], [0], [1], [0, 0, 1, 1], [], []>} : vector<2x4xf32>, vector<4x256xf32>, vector<2x256xf32> -> vector<2x256xf32>
    %55 = arith.addf %43, %54 : vector<2x256xf32>
    %c4_55 = arith.constant 4 : index
    %c0_56 = arith.constant 0 : index
    %c0_57 = arith.constant 0 : index
    %56 = vector.load %arg4[%c4_55, %c0_56, %c0_57] : memref<7x2x4xf32, #tpu.memory_space<vmem>>, vector<1x2x4xf32>
    %57 = vector.shape_cast %56 : vector<1x2x4xf32> to vector<2x4xf32>
    %c0_58 = arith.constant 0 : index
    %c0_59 = arith.constant 0 : index
    %c64_60 = arith.constant 64 : index
    %58 = vector.load %arg2[%c0_58, %c0_59, %c64_60] : memref<2x4x352xf32, #tpu.memory_space<vmem>>, vector<1x4x256xf32>
    %59 = vector.shape_cast %58 : vector<1x4x256xf32> to vector<4x256xf32>
    %cst_61 = arith.constant dense<0.000000e+00> : vector<2x256xf32>
    %60 = tpu.matmul %57, %59, %cst_61 {dimension_numbers = #tpu.dot_dimension_numbers<[1], [0], [0], [1], [0, 0, 1, 1], [], []>} : vector<2x4xf32>, vector<4x256xf32>, vector<2x256xf32> -> vector<2x256xf32>
    %61 = arith.addf %49, %60 : vector<2x256xf32>
    %c5 = arith.constant 5 : index
    %c0_62 = arith.constant 0 : index
    %c0_63 = arith.constant 0 : index
    %62 = vector.load %arg3[%c5, %c0_62, %c0_63] : memref<7x2x4xf32, #tpu.memory_space<vmem>>, vector<1x2x4xf32>
    %63 = vector.shape_cast %62 : vector<1x2x4xf32> to vector<2x4xf32>
    %c0_64 = arith.constant 0 : index
    %c0_65 = arith.constant 0 : index
    %c80 = arith.constant 80 : index
    %64 = vector.load %arg1[%c0_64, %c0_65, %c80] : memref<2x4x352xf32, #tpu.memory_space<vmem>>, vector<1x4x256xf32>
    %65 = vector.shape_cast %64 : vector<1x4x256xf32> to vector<4x256xf32>
    %cst_66 = arith.constant dense<0.000000e+00> : vector<2x256xf32>
    %66 = tpu.matmul %63, %65, %cst_66 {dimension_numbers = #tpu.dot_dimension_numbers<[1], [0], [0], [1], [0, 0, 1, 1], [], []>} : vector<2x4xf32>, vector<4x256xf32>, vector<2x256xf32> -> vector<2x256xf32>
    %67 = arith.addf %55, %66 : vector<2x256xf32>
    %c5_67 = arith.constant 5 : index
    %c0_68 = arith.constant 0 : index
    %c0_69 = arith.constant 0 : index
    %68 = vector.load %arg4[%c5_67, %c0_68, %c0_69] : memref<7x2x4xf32, #tpu.memory_space<vmem>>, vector<1x2x4xf32>
    %69 = vector.shape_cast %68 : vector<1x2x4xf32> to vector<2x4xf32>
    %c0_70 = arith.constant 0 : index
    %c0_71 = arith.constant 0 : index
    %c80_72 = arith.constant 80 : index
    %70 = vector.load %arg2[%c0_70, %c0_71, %c80_72] : memref<2x4x352xf32, #tpu.memory_space<vmem>>, vector<1x4x256xf32>
    %71 = vector.shape_cast %70 : vector<1x4x256xf32> to vector<4x256xf32>
    %cst_73 = arith.constant dense<0.000000e+00> : vector<2x256xf32>
    %72 = tpu.matmul %69, %71, %cst_73 {dimension_numbers = #tpu.dot_dimension_numbers<[1], [0], [0], [1], [0, 0, 1, 1], [], []>} : vector<2x4xf32>, vector<4x256xf32>, vector<2x256xf32> -> vector<2x256xf32>
    %73 = arith.addf %61, %72 : vector<2x256xf32>
    %c6 = arith.constant 6 : index
    %c0_74 = arith.constant 0 : index
    %c0_75 = arith.constant 0 : index
    %74 = vector.load %arg3[%c6, %c0_74, %c0_75] : memref<7x2x4xf32, #tpu.memory_space<vmem>>, vector<1x2x4xf32>
    %75 = vector.shape_cast %74 : vector<1x2x4xf32> to vector<2x4xf32>
    %c0_76 = arith.constant 0 : index
    %c0_77 = arith.constant 0 : index
    %c96 = arith.constant 96 : index
    %76 = vector.load %arg1[%c0_76, %c0_77, %c96] : memref<2x4x352xf32, #tpu.memory_space<vmem>>, vector<1x4x256xf32>
    %77 = vector.shape_cast %76 : vector<1x4x256xf32> to vector<4x256xf32>
    %cst_78 = arith.constant dense<0.000000e+00> : vector<2x256xf32>
    %78 = tpu.matmul %75, %77, %cst_78 {dimension_numbers = #tpu.dot_dimension_numbers<[1], [0], [0], [1], [0, 0, 1, 1], [], []>} : vector<2x4xf32>, vector<4x256xf32>, vector<2x256xf32> -> vector<2x256xf32>
    %79 = arith.addf %67, %78 : vector<2x256xf32>
    %c6_79 = arith.constant 6 : index
    %c0_80 = arith.constant 0 : index
    %c0_81 = arith.constant 0 : index
    %80 = vector.load %arg4[%c6_79, %c0_80, %c0_81] : memref<7x2x4xf32, #tpu.memory_space<vmem>>, vector<1x2x4xf32>
    %81 = vector.shape_cast %80 : vector<1x2x4xf32> to vector<2x4xf32>
    %c0_82 = arith.constant 0 : index
    %c0_83 = arith.constant 0 : index
    %c96_84 = arith.constant 96 : index
    %82 = vector.load %arg2[%c0_82, %c0_83, %c96_84] : memref<2x4x352xf32, #tpu.memory_space<vmem>>, vector<1x4x256xf32>
    %83 = vector.shape_cast %82 : vector<1x4x256xf32> to vector<4x256xf32>
    %cst_85 = arith.constant dense<0.000000e+00> : vector<2x256xf32>
    %84 = tpu.matmul %81, %83, %cst_85 {dimension_numbers = #tpu.dot_dimension_numbers<[1], [0], [0], [1], [0, 0, 1, 1], [], []>} : vector<2x4xf32>, vector<4x256xf32>, vector<2x256xf32> -> vector<2x256xf32>
    %85 = arith.addf %73, %84 : vector<2x256xf32>
    %86 = tpu.concatenate %79, %85 in 0 : vector<2x256xf32>, vector<2x256xf32> -> vector<4x256xf32>
    %c0_86 = arith.constant 0 : index
    %c0_87 = arith.constant 0 : index
    %87 = vector.load %arg5[%c0_86, %c0_87] : memref<4x1xf32, #tpu.memory_space<vmem>>, vector<4x1xf32>
    %88 = vector.broadcast %87 : vector<4x1xf32> to vector<4x256xf32>
    %89 = arith.addf %86, %88 : vector<4x256xf32>
    %cst_88 = arith.constant 0.000000e+00 : f32
    %90 = vector.broadcast %cst_88 : f32 to vector<4x256xf32>
    %91 = arith.subf %90, %89 : vector<4x256xf32>
    %92 = math.exp %91 : vector<4x256xf32>
    %cst_89 = arith.constant 1.000000e+00 : f32
    %93 = vector.broadcast %cst_89 : f32 to vector<4x256xf32>
    %94 = arith.addf %93, %92 : vector<4x256xf32>
    %95 = tpu.reciprocal %94 {approx = true} : vector<4x256xf32> -> vector<4x256xf32>
    %cst_90 = arith.constant 2.000000e+00 : f32
    %96 = vector.broadcast %cst_90 : f32 to vector<4x256xf32>
    %97 = arith.mulf %96, %95 : vector<4x256xf32>
    %c0_91 = arith.constant 0 : index
    %c0_92 = arith.constant 0 : index
    %c0_93 = arith.constant 0 : index
    %98 = vector.load %arg6[%c0_91, %c0_92, %c0_93] : memref<2x4x256xf32, #tpu.memory_space<vmem>>, vector<1x4x256xf32>
    %99 = vector.shape_cast %98 : vector<1x4x256xf32> to vector<4x256xf32>
    %100 = vector.shape_cast %97 : vector<4x256xf32> to vector<1x4x256xf32>
    tpu.vector_store %arg6[%c0_91, %c0_92, %c0_93], %100 {strides = array<i32>} : memref<2x4x256xf32, #tpu.memory_space<vmem>>, vector<1x4x256xf32>,
    %cst_94 = arith.constant 0.000000e+00 : f32
    %101 = vector.broadcast %cst_94 : f32 to vector<2x256xf32>
    %cst_95 = arith.constant 0.000000e+00 : f32
    %102 = vector.broadcast %cst_95 : f32 to vector<2x256xf32>
    %c0_96 = arith.constant 0 : index
    %c0_97 = arith.constant 0 : index
    %c0_98 = arith.constant 0 : index
    %103 = vector.load %arg3[%c0_96, %c0_97, %c0_98] : memref<7x2x4xf32, #tpu.memory_space<vmem>>, vector<1x2x4xf32>
    %104 = vector.shape_cast %103 : vector<1x2x4xf32> to vector<2x4xf32>
    %c1_99 = arith.constant 1 : index
    %c0_100 = arith.constant 0 : index
    %c0_101 = arith.constant 0 : index
    %105 = vector.load %arg1[%c1_99, %c0_100, %c0_101] : memref<2x4x352xf32, #tpu.memory_space<vmem>>, vector<1x4x256xf32>
    %106 = vector.shape_cast %105 : vector<1x4x256xf32> to vector<4x256xf32>
    %cst_102 = arith.constant dense<0.000000e+00> : vector<2x256xf32>
    %107 = tpu.matmul %104, %106, %cst_102 {dimension_numbers = #tpu.dot_dimension_numbers<[1], [0], [0], [1], [0, 0, 1, 1], [], []>} : vector<2x4xf32>, vector<4x256xf32>, vector<2x256xf32> -> vector<2x256xf32>
    %108 = arith.addf %101, %107 : vector<2x256xf32>
    %c0_103 = arith.constant 0 : index
    %c0_104 = arith.constant 0 : index
    %c0_105 = arith.constant 0 : index
    %109 = vector.load %arg4[%c0_103, %c0_104, %c0_105] : memref<7x2x4xf32, #tpu.memory_space<vmem>>, vector<1x2x4xf32>
    %110 = vector.shape_cast %109 : vector<1x2x4xf32> to vector<2x4xf32>
    %c1_106 = arith.constant 1 : index
    %c0_107 = arith.constant 0 : index
    %c0_108 = arith.constant 0 : index
    %111 = vector.load %arg2[%c1_106, %c0_107, %c0_108] : memref<2x4x352xf32, #tpu.memory_space<vmem>>, vector<1x4x256xf32>
    %112 = vector.shape_cast %111 : vector<1x4x256xf32> to vector<4x256xf32>
    %cst_109 = arith.constant dense<0.000000e+00> : vector<2x256xf32>
    %113 = tpu.matmul %110, %112, %cst_109 {dimension_numbers = #tpu.dot_dimension_numbers<[1], [0], [0], [1], [0, 0, 1, 1], [], []>} : vector<2x4xf32>, vector<4x256xf32>, vector<2x256xf32> -> vector<2x256xf32>
    %114 = arith.addf %102, %113 : vector<2x256xf32>
    %c1_110 = arith.constant 1 : index
    %c0_111 = arith.constant 0 : index
    %c0_112 = arith.constant 0 : index
    %115 = vector.load %arg3[%c1_110, %c0_111, %c0_112] : memref<7x2x4xf32, #tpu.memory_space<vmem>>, vector<1x2x4xf32>
    %116 = vector.shape_cast %115 : vector<1x2x4xf32> to vector<2x4xf32>
    %c1_113 = arith.constant 1 : index
    %c0_114 = arith.constant 0 : index
    %c16_115 = arith.constant 16 : index
    %117 = vector.load %arg1[%c1_113, %c0_114, %c16_115] : memref<2x4x352xf32, #tpu.memory_space<vmem>>, vector<1x4x256xf32>
    %118 = vector.shape_cast %117 : vector<1x4x256xf32> to vector<4x256xf32>
    %cst_116 = arith.constant dense<0.000000e+00> : vector<2x256xf32>
    %119 = tpu.matmul %116, %118, %cst_116 {dimension_numbers = #tpu.dot_dimension_numbers<[1], [0], [0], [1], [0, 0, 1, 1], [], []>} : vector<2x4xf32>, vector<4x256xf32>, vector<2x256xf32> -> vector<2x256xf32>
    %120 = arith.addf %108, %119 : vector<2x256xf32>
    %c1_117 = arith.constant 1 : index
    %c0_118 = arith.constant 0 : index
    %c0_119 = arith.constant 0 : index
    %121 = vector.load %arg4[%c1_117, %c0_118, %c0_119] : memref<7x2x4xf32, #tpu.memory_space<vmem>>, vector<1x2x4xf32>
    %122 = vector.shape_cast %121 : vector<1x2x4xf32> to vector<2x4xf32>
    %c1_120 = arith.constant 1 : index
    %c0_121 = arith.constant 0 : index
    %c16_122 = arith.constant 16 : index
    %123 = vector.load %arg2[%c1_120, %c0_121, %c16_122] : memref<2x4x352xf32, #tpu.memory_space<vmem>>, vector<1x4x256xf32>
    %124 = vector.shape_cast %123 : vector<1x4x256xf32> to vector<4x256xf32>
    %cst_123 = arith.constant dense<0.000000e+00> : vector<2x256xf32>
    %125 = tpu.matmul %122, %124, %cst_123 {dimension_numbers = #tpu.dot_dimension_numbers<[1], [0], [0], [1], [0, 0, 1, 1], [], []>} : vector<2x4xf32>, vector<4x256xf32>, vector<2x256xf32> -> vector<2x256xf32>
    %126 = arith.addf %114, %125 : vector<2x256xf32>
    %c2_124 = arith.constant 2 : index
    %c0_125 = arith.constant 0 : index
    %c0_126 = arith.constant 0 : index
    %127 = vector.load %arg3[%c2_124, %c0_125, %c0_126] : memref<7x2x4xf32, #tpu.memory_space<vmem>>, vector<1x2x4xf32>
    %128 = vector.shape_cast %127 : vector<1x2x4xf32> to vector<2x4xf32>
    %c1_127 = arith.constant 1 : index
    %c0_128 = arith.constant 0 : index
    %c32_129 = arith.constant 32 : index
    %129 = vector.load %arg1[%c1_127, %c0_128, %c32_129] : memref<2x4x352xf32, #tpu.memory_space<vmem>>, vector<1x4x256xf32>
    %130 = vector.shape_cast %129 : vector<1x4x256xf32> to vector<4x256xf32>
    %cst_130 = arith.constant dense<0.000000e+00> : vector<2x256xf32>
    %131 = tpu.matmul %128, %130, %cst_130 {dimension_numbers = #tpu.dot_dimension_numbers<[1], [0], [0], [1], [0, 0, 1, 1], [], []>} : vector<2x4xf32>, vector<4x256xf32>, vector<2x256xf32> -> vector<2x256xf32>
    %132 = arith.addf %120, %131 : vector<2x256xf32>
    %c2_131 = arith.constant 2 : index
    %c0_132 = arith.constant 0 : index
    %c0_133 = arith.constant 0 : index
    %133 = vector.load %arg4[%c2_131, %c0_132, %c0_133] : memref<7x2x4xf32, #tpu.memory_space<vmem>>, vector<1x2x4xf32>
    %134 = vector.shape_cast %133 : vector<1x2x4xf32> to vector<2x4xf32>
    %c1_134 = arith.constant 1 : index
    %c0_135 = arith.constant 0 : index
    %c32_136 = arith.constant 32 : index
    %135 = vector.load %arg2[%c1_134, %c0_135, %c32_136] : memref<2x4x352xf32, #tpu.memory_space<vmem>>, vector<1x4x256xf32>
    %136 = vector.shape_cast %135 : vector<1x4x256xf32> to vector<4x256xf32>
    %cst_137 = arith.constant dense<0.000000e+00> : vector<2x256xf32>
    %137 = tpu.matmul %134, %136, %cst_137 {dimension_numbers = #tpu.dot_dimension_numbers<[1], [0], [0], [1], [0, 0, 1, 1], [], []>} : vector<2x4xf32>, vector<4x256xf32>, vector<2x256xf32> -> vector<2x256xf32>
    %138 = arith.addf %126, %137 : vector<2x256xf32>
    %c3_138 = arith.constant 3 : index
    %c0_139 = arith.constant 0 : index
    %c0_140 = arith.constant 0 : index
    %139 = vector.load %arg3[%c3_138, %c0_139, %c0_140] : memref<7x2x4xf32, #tpu.memory_space<vmem>>, vector<1x2x4xf32>
    %140 = vector.shape_cast %139 : vector<1x2x4xf32> to vector<2x4xf32>
    %c1_141 = arith.constant 1 : index
    %c0_142 = arith.constant 0 : index
    %c48_143 = arith.constant 48 : index
    %141 = vector.load %arg1[%c1_141, %c0_142, %c48_143] : memref<2x4x352xf32, #tpu.memory_space<vmem>>, vector<1x4x256xf32>
    %142 = vector.shape_cast %141 : vector<1x4x256xf32> to vector<4x256xf32>
    %cst_144 = arith.constant dense<0.000000e+00> : vector<2x256xf32>
    %143 = tpu.matmul %140, %142, %cst_144 {dimension_numbers = #tpu.dot_dimension_numbers<[1], [0], [0], [1], [0, 0, 1, 1], [], []>} : vector<2x4xf32>, vector<4x256xf32>, vector<2x256xf32> -> vector<2x256xf32>
    %144 = arith.addf %132, %143 : vector<2x256xf32>
    %c3_145 = arith.constant 3 : index
    %c0_146 = arith.constant 0 : index
    %c0_147 = arith.constant 0 : index
    %145 = vector.load %arg4[%c3_145, %c0_146, %c0_147] : memref<7x2x4xf32, #tpu.memory_space<vmem>>, vector<1x2x4xf32>
    %146 = vector.shape_cast %145 : vector<1x2x4xf32> to vector<2x4xf32>
    %c1_148 = arith.constant 1 : index
    %c0_149 = arith.constant 0 : index
    %c48_150 = arith.constant 48 : index
    %147 = vector.load %arg2[%c1_148, %c0_149, %c48_150] : memref<2x4x352xf32, #tpu.memory_space<vmem>>, vector<1x4x256xf32>
    %148 = vector.shape_cast %147 : vector<1x4x256xf32> to vector<4x256xf32>
    %cst_151 = arith.constant dense<0.000000e+00> : vector<2x256xf32>
    %149 = tpu.matmul %146, %148, %cst_151 {dimension_numbers = #tpu.dot_dimension_numbers<[1], [0], [0], [1], [0, 0, 1, 1], [], []>} : vector<2x4xf32>, vector<4x256xf32>, vector<2x256xf32> -> vector<2x256xf32>
    %150 = arith.addf %138, %149 : vector<2x256xf32>
    %c4_152 = arith.constant 4 : index
    %c0_153 = arith.constant 0 : index
    %c0_154 = arith.constant 0 : index
    %151 = vector.load %arg3[%c4_152, %c0_153, %c0_154] : memref<7x2x4xf32, #tpu.memory_space<vmem>>, vector<1x2x4xf32>
    %152 = vector.shape_cast %151 : vector<1x2x4xf32> to vector<2x4xf32>
    %c1_155 = arith.constant 1 : index
    %c0_156 = arith.constant 0 : index
    %c64_157 = arith.constant 64 : index
    %153 = vector.load %arg1[%c1_155, %c0_156, %c64_157] : memref<2x4x352xf32, #tpu.memory_space<vmem>>, vector<1x4x256xf32>
    %154 = vector.shape_cast %153 : vector<1x4x256xf32> to vector<4x256xf32>
    %cst_158 = arith.constant dense<0.000000e+00> : vector<2x256xf32>
    %155 = tpu.matmul %152, %154, %cst_158 {dimension_numbers = #tpu.dot_dimension_numbers<[1], [0], [0], [1], [0, 0, 1, 1], [], []>} : vector<2x4xf32>, vector<4x256xf32>, vector<2x256xf32> -> vector<2x256xf32>
    %156 = arith.addf %144, %155 : vector<2x256xf32>
    %c4_159 = arith.constant 4 : index
    %c0_160 = arith.constant 0 : index
    %c0_161 = arith.constant 0 : index
    %157 = vector.load %arg4[%c4_159, %c0_160, %c0_161] : memref<7x2x4xf32, #tpu.memory_space<vmem>>, vector<1x2x4xf32>
    %158 = vector.shape_cast %157 : vector<1x2x4xf32> to vector<2x4xf32>
    %c1_162 = arith.constant 1 : index
    %c0_163 = arith.constant 0 : index
    %c64_164 = arith.constant 64 : index
    %159 = vector.load %arg2[%c1_162, %c0_163, %c64_164] : memref<2x4x352xf32, #tpu.memory_space<vmem>>, vector<1x4x256xf32>
    %160 = vector.shape_cast %159 : vector<1x4x256xf32> to vector<4x256xf32>
    %cst_165 = arith.constant dense<0.000000e+00> : vector<2x256xf32>
    %161 = tpu.matmul %158, %160, %cst_165 {dimension_numbers = #tpu.dot_dimension_numbers<[1], [0], [0], [1], [0, 0, 1, 1], [], []>} : vector<2x4xf32>, vector<4x256xf32>, vector<2x256xf32> -> vector<2x256xf32>
    %162 = arith.addf %150, %161 : vector<2x256xf32>
    %c5_166 = arith.constant 5 : index
    %c0_167 = arith.constant 0 : index
    %c0_168 = arith.constant 0 : index
    %163 = vector.load %arg3[%c5_166, %c0_167, %c0_168] : memref<7x2x4xf32, #tpu.memory_space<vmem>>, vector<1x2x4xf32>
    %164 = vector.shape_cast %163 : vector<1x2x4xf32> to vector<2x4xf32>
    %c1_169 = arith.constant 1 : index
    %c0_170 = arith.constant 0 : index
    %c80_171 = arith.constant 80 : index
    %165 = vector.load %arg1[%c1_169, %c0_170, %c80_171] : memref<2x4x352xf32, #tpu.memory_space<vmem>>, vector<1x4x256xf32>
    %166 = vector.shape_cast %165 : vector<1x4x256xf32> to vector<4x256xf32>
    %cst_172 = arith.constant dense<0.000000e+00> : vector<2x256xf32>
    %167 = tpu.matmul %164, %166, %cst_172 {dimension_numbers = #tpu.dot_dimension_numbers<[1], [0], [0], [1], [0, 0, 1, 1], [], []>} : vector<2x4xf32>, vector<4x256xf32>, vector<2x256xf32> -> vector<2x256xf32>
    %168 = arith.addf %156, %167 : vector<2x256xf32>
    %c5_173 = arith.constant 5 : index
    %c0_174 = arith.constant 0 : index
    %c0_175 = arith.constant 0 : index
    %169 = vector.load %arg4[%c5_173, %c0_174, %c0_175] : memref<7x2x4xf32, #tpu.memory_space<vmem>>, vector<1x2x4xf32>
    %170 = vector.shape_cast %169 : vector<1x2x4xf32> to vector<2x4xf32>
    %c1_176 = arith.constant 1 : index
    %c0_177 = arith.constant 0 : index
    %c80_178 = arith.constant 80 : index
    %171 = vector.load %arg2[%c1_176, %c0_177, %c80_178] : memref<2x4x352xf32, #tpu.memory_space<vmem>>, vector<1x4x256xf32>
    %172 = vector.shape_cast %171 : vector<1x4x256xf32> to vector<4x256xf32>
    %cst_179 = arith.constant dense<0.000000e+00> : vector<2x256xf32>
    %173 = tpu.matmul %170, %172, %cst_179 {dimension_numbers = #tpu.dot_dimension_numbers<[1], [0], [0], [1], [0, 0, 1, 1], [], []>} : vector<2x4xf32>, vector<4x256xf32>, vector<2x256xf32> -> vector<2x256xf32>
    %174 = arith.addf %162, %173 : vector<2x256xf32>
    %c6_180 = arith.constant 6 : index
    %c0_181 = arith.constant 0 : index
    %c0_182 = arith.constant 0 : index
    %175 = vector.load %arg3[%c6_180, %c0_181, %c0_182] : memref<7x2x4xf32, #tpu.memory_space<vmem>>, vector<1x2x4xf32>
    %176 = vector.shape_cast %175 : vector<1x2x4xf32> to vector<2x4xf32>
    %c1_183 = arith.constant 1 : index
    %c0_184 = arith.constant 0 : index
    %c96_185 = arith.constant 96 : index
    %177 = vector.load %arg1[%c1_183, %c0_184, %c96_185] : memref<2x4x352xf32, #tpu.memory_space<vmem>>, vector<1x4x256xf32>
    %178 = vector.shape_cast %177 : vector<1x4x256xf32> to vector<4x256xf32>
    %cst_186 = arith.constant dense<0.000000e+00> : vector<2x256xf32>
    %179 = tpu.matmul %176, %178, %cst_186 {dimension_numbers = #tpu.dot_dimension_numbers<[1], [0], [0], [1], [0, 0, 1, 1], [], []>} : vector<2x4xf32>, vector<4x256xf32>, vector<2x256xf32> -> vector<2x256xf32>
    %180 = arith.addf %168, %179 : vector<2x256xf32>
    %c6_187 = arith.constant 6 : index
    %c0_188 = arith.constant 0 : index
    %c0_189 = arith.constant 0 : index
    %181 = vector.load %arg4[%c6_187, %c0_188, %c0_189] : memref<7x2x4xf32, #tpu.memory_space<vmem>>, vector<1x2x4xf32>
    %182 = vector.shape_cast %181 : vector<1x2x4xf32> to vector<2x4xf32>
    %c1_190 = arith.constant 1 : index
    %c0_191 = arith.constant 0 : index
    %c96_192 = arith.constant 96 : index
    %183 = vector.load %arg2[%c1_190, %c0_191, %c96_192] : memref<2x4x352xf32, #tpu.memory_space<vmem>>, vector<1x4x256xf32>
    %184 = vector.shape_cast %183 : vector<1x4x256xf32> to vector<4x256xf32>
    %cst_193 = arith.constant dense<0.000000e+00> : vector<2x256xf32>
    %185 = tpu.matmul %182, %184, %cst_193 {dimension_numbers = #tpu.dot_dimension_numbers<[1], [0], [0], [1], [0, 0, 1, 1], [], []>} : vector<2x4xf32>, vector<4x256xf32>, vector<2x256xf32> -> vector<2x256xf32>
    %186 = arith.addf %174, %185 : vector<2x256xf32>
    %187 = tpu.concatenate %180, %186 in 0 : vector<2x256xf32>, vector<2x256xf32> -> vector<4x256xf32>
    %c0_194 = arith.constant 0 : index
    %c0_195 = arith.constant 0 : index
    %188 = vector.load %arg5[%c0_194, %c0_195] : memref<4x1xf32, #tpu.memory_space<vmem>>, vector<4x1xf32>
    %189 = vector.broadcast %188 : vector<4x1xf32> to vector<4x256xf32>
    %190 = arith.addf %187, %189 : vector<4x256xf32>
    %cst_196 = arith.constant 0.000000e+00 : f32
    %191 = vector.broadcast %cst_196 : f32 to vector<4x256xf32>
    %192 = arith.subf %191, %190 : vector<4x256xf32>
    %193 = math.exp %192 : vector<4x256xf32>
    %cst_197 = arith.constant 1.000000e+00 : f32
    %194 = vector.broadcast %cst_197 : f32 to vector<4x256xf32>
    %195 = arith.addf %194, %193 : vector<4x256xf32>
    %196 = tpu.reciprocal %195 {approx = true} : vector<4x256xf32> -> vector<4x256xf32>
    %cst_198 = arith.constant 2.000000e+00 : f32
    %197 = vector.broadcast %cst_198 : f32 to vector<4x256xf32>
    %198 = arith.mulf %197, %196 : vector<4x256xf32>
    %c1_199 = arith.constant 1 : index
    %c0_200 = arith.constant 0 : index
    %c0_201 = arith.constant 0 : index
    %199 = vector.load %arg6[%c1_199, %c0_200, %c0_201] : memref<2x4x256xf32, #tpu.memory_space<vmem>>, vector<1x4x256xf32>
    %200 = vector.shape_cast %199 : vector<1x4x256xf32> to vector<4x256xf32>
    %201 = vector.shape_cast %198 : vector<4x256xf32> to vector<1x4x256xf32>
    tpu.vector_store %arg6[%c1_199, %c0_200, %c0_201], %201 {strides = array<i32>} : memref<2x4x256xf32, #tpu.memory_space<vmem>>, vector<1x4x256xf32>,
    return
  }
  func.func @transform_0(%arg0: i32) -> (i32, i32, i32) {
    %c0_i32 = arith.constant 0 : i32
    %c0_i32_0 = arith.constant 0 : i32
    %c0_i32_1 = arith.constant 0 : i32
    return %arg0, %c0_i32, %c0_i32_0 : i32, i32, i32
  }
  func.func @transform_1(%arg0: i32) -> (i32, i32, i32) {
    %c0_i32 = arith.constant 0 : i32
    %c0_i32_0 = arith.constant 0 : i32
    %c0_i32_1 = arith.constant 0 : i32
    return %arg0, %c0_i32, %c0_i32_0 : i32, i32, i32
  }
  func.func @transform_2(%arg0: i32) -> (i32, i32, i32) {
    %c0_i32 = arith.constant 0 : i32
    %c0_i32_0 = arith.constant 0 : i32
    %c0_i32_1 = arith.constant 0 : i32
    %c0_i32_2 = arith.constant 0 : i32
    return %c0_i32, %c0_i32_0, %c0_i32_1 : i32, i32, i32
  }
  func.func @transform_3(%arg0: i32) -> (i32, i32, i32) {
    %c0_i32 = arith.constant 0 : i32
    %c0_i32_0 = arith.constant 0 : i32
    %c0_i32_1 = arith.constant 0 : i32
    %c0_i32_2 = arith.constant 0 : i32
    return %c0_i32, %c0_i32_0, %c0_i32_1 : i32, i32, i32
  }
  func.func @transform_4(%arg0: i32) -> (i32, i32) {
    %c0_i32 = arith.constant 0 : i32
    %c0_i32_0 = arith.constant 0 : i32
    %c0_i32_1 = arith.constant 0 : i32
    return %c0_i32, %c0_i32_0 : i32, i32
  }
  func.func @transform_5(%arg0: i32) -> (i32, i32, i32) {
    %c0_i32 = arith.constant 0 : i32
    %c0_i32_0 = arith.constant 0 : i32
    %c0_i32_1 = arith.constant 0 : i32
    return %arg0, %c0_i32, %c0_i32_0 : i32, i32, i32
  }
}

</mosaic_0001>

<llo_original>
// kernel: tpu_custom_call.1
$region0: #{tpu_custom_call.1}
  #allocation0 [shape = 'u32[]', space=smem, size = 0x4, offset = 0x4, fixed_abs, tag = 'smem constant byte address 0x4 - core index']
  #allocation1 [shape = 'u32[72,128]{1,0:T(1,128)}', space=vmem, size = 0x9000, scoped, tag = 'internal scratch']
  %s0 = inlined_call_operand.vmem [shape: f32[2,4,352], index: 0, kind: input, shape index: {}]
  %s1 = inlined_call_operand.vmem [shape: f32[2,4,352], index: 1, kind: input, shape index: {}]
  %s2 = inlined_call_operand.vmem [shape: f32[7,2,4], index: 2, kind: input, shape index: {}]
  %s3 = inlined_call_operand.vmem [shape: f32[7,2,4], index: 3, kind: input, shape index: {}]
  %s4 = inlined_call_operand.vmem [shape: f32[4,1], index: 4, kind: input, shape index: {}]
  %s5 = inlined_call_operand.hbm [shape: f32[2,4,256], index: 5, kind: output, shape index: {}]
  %s6 = sld [smem:[#allocation0]]
  $region30: #{tpu_custom_call.1} parent=0
    _
  %s8 = ssub.s32 1, %s6
  %s9 = scalar_select 0, %s8, %s6
  $region1: #{tpu_custom_call.1} parent=0
    #allocation2 [shape = 'u8[8192]{0}', space=vmem, size = 0x2000, scoped, tag = 'output window, operand 0, single buffered']
    #allocation3 [shape = 's32[1]{0}', space=sflag, size = 0x4, scoped, tag = 'scoped memory for tpu_custom_call.1']
    %10 = vsyncpa [#allocation3], 0
    // Predicated region
    $region2: #{tpu_custom_call.1} parent=1 // pred_check
      _
    $region3: #{tpu_custom_call.1} parent=1 // pred_check_branch
      %12 = sbr.rel (0) target = $region5
    $region4: #{tpu_custom_call.1} parent=1 // pred_region
      _
    $region5: #{tpu_custom_call.1} parent=1 // pred_fallthru
      _
    // Predicated region
    $region6: #{tpu_custom_call.1} parent=1 // pred_check
      _
    $region7: #{tpu_custom_call.1} parent=1 // pred_check_branch
      %14 = sbr.rel (0) target = $region9
    $region8: #{tpu_custom_call.1} parent=1 // pred_region
      _
    $region9: #{tpu_custom_call.1} parent=1 // pred_fallthru
      _
    // Predicated region
    $region10: #{tpu_custom_call.1} parent=1 // pred_check
      _
    $region11: #{tpu_custom_call.1} parent=1 // pred_check_branch
      %16 = sbr.rel (0) target = $region13
    $region12: #{tpu_custom_call.1} parent=1 // pred_region
      _
    $region13: #{tpu_custom_call.1} parent=1 // pred_fallthru
      _
    // Predicated region
    $region14: #{tpu_custom_call.1} parent=1 // pred_check
      _
    $region15: #{tpu_custom_call.1} parent=1 // pred_check_branch
      %18 = sbr.rel (0) target = $region17
    $region16: #{tpu_custom_call.1} parent=1 // pred_region
      _
    $region17: #{tpu_custom_call.1} parent=1 // pred_fallthru
      _
    // Predicated region
    $region18: #{tpu_custom_call.1} parent=1 // pred_check
      _
    $region19: #{tpu_custom_call.1} parent=1 // pred_check_branch
      %20 = sbr.rel (0) target = $region21
    $region20: #{tpu_custom_call.1} parent=1 // pred_region
      _
    $region21: #{tpu_custom_call.1} parent=1 // pred_fallthru
      _
    %v21 = vld [vmem:[%s2] sm:$0x3]
    %v22 = vld [vmem:[%s0] sm:$0xff]
    %v23 = vld [vmem:[%s3] sm:$0x3]
    %v24 = vld [vmem:[%s1] sm:$0xff]
    %s25 = scalar_lea.vmem %s2, 2
    %v26 = vld [vmem:[%s25] sm:$0x3]
    %v27 = vld [vmem:[%s0 + $0x8] sm:$0xf]
    %30 = vst [vmem:[#allocation1] ss:$2 sm:$0xff] %v22
    %s31 = scalar_lea.vmem [#allocation1], 16
    %32 = vst [vmem:[%s31] ss:$2 sm:$0xff] %v27
    %v33 = vld.sshfl [vmem:[#allocation1] sm:$0xff pattern:$0x75316420]
    %v34 = vld.sshfl [vmem:[#allocation1 + $0x8] sm:$0xff pattern:$0x75316420]
    %v35 = vld.sshfl [vmem:[#allocation1 + $0x10] sm:$0xff pattern:$0x75316420]
    %36 = vrot.lane.b32.xlu0 %v33, 112
    %v37 = vpop.permute.xlu0 %36
    %38 = vrot.lane.b32.xlu0 %v34, 112
    %v39 = vpop.permute.xlu0 %38
    %40 = vrot.lane.b32.xlu0 %v35, 112
    %v41 = vpop.permute.xlu0 %40
    %vm42 = vcmask 916480
    %v43 = vsel %vm42, %v37, %v39
    %v44 = vsel %vm42, %v39, %v41
    %vm45 = vcmask 31744
    %v47 = vsel %vm45, %v26, 0
    %vm49 = vcmask 1043456
    %v50 = vsel %vm49, %v43, 0
    %v52 = vsel %vm49, %v44, 0
    %54 = vmatpush.msra.mxu0 0.0
    %55 = vmatpush.msra.mxu0 0.0
    %56 = vmatpush.msra.mxu0 0.0
    %57 = vmatpush.msra.mxu0 0.0
    %58 = vmatpush.msra.mxu0 0.0
    %59 = vmatpush.msra.mxu0 0.0
    %60 = vmatpush.msra.mxu0 0.0
    %61 = vmatpush.msra.mxu0 0.0
    %62 = vmatpush.msra.mxu0 0.0
    %63 = vmatpush.msra.mxu0 0.0
    %64 = vmatpush.msra.mxu0 0.0
    %65 = vmatpush.msra.mxu0 0.0
    %66 = vmatpush.msra.mxu0 0.0
    %67 = vmatpush.msra.mxu0 0.0
    %68 = vmatpush.msra.mxu0 0.0
    %69 = vmatpush.msra.mxu0 %v50
    %70 = vmatmul.f32.gmra.mxu0 %v47
    %v71 = vpop.f32.mrf.mxu0
    %v72 = vadd.f32 0.0, %v71
    %73 = vdwg.mxu0
    %74 = vmatpush.msra.mxu0 0.0
    %75 = vmatpush.msra.mxu0 0.0
    %76 = vmatpush.msra.mxu0 0.0
    %77 = vmatpush.msra.mxu0 0.0
    %78 = vmatpush.msra.mxu0 0.0
    %79 = vmatpush.msra.mxu0 0.0
    %80 = vmatpush.msra.mxu0 0.0
    %81 = vmatpush.msra.mxu0 0.0
    %82 = vmatpush.msra.mxu0 0.0
    %83 = vmatpush.msra.mxu0 0.0
    %84 = vmatpush.msra.mxu0 0.0
    %85 = vmatpush.msra.mxu0 0.0
    %86 = vmatpush.msra.mxu0 0.0
    %87 = vmatpush.msra.mxu0 0.0
    %88 = vmatpush.msra.mxu0 0.0
    %89 = vmatpush.msra.mxu0 %v52
    %90 = vmatmul.f32.gmra.mxu0 %v47
    %v91 = vpop.f32.mrf.mxu0
    %v92 = vadd.f32 0.0, %v91
    %93 = vdwg.mxu0
    %94 = vst [vmem:[#allocation1] ss:$2 sm:$0xff] %v22
    %v95 = vld.sshfl [vmem:[#allocation1] sm:$0xff pattern:$0x75316420]
    %v96 = vld.sshfl [vmem:[#allocation1 + $0x8] sm:$0xff pattern:$0x75316420]
    %v98 = vsel %vm45, %v21, 0
    %v100 = vsel %vm49, %v95, 0
    %v102 = vsel %vm49, %v96, 0
    %104 = vmatpush.msra.mxu0 0.0
    %105 = vmatpush.msra.mxu0 0.0
    %106 = vmatpush.msra.mxu0 0.0
    %107 = vmatpush.msra.mxu0 0.0
    %108 = vmatpush.msra.mxu0 0.0
    %109 = vmatpush.msra.mxu0 0.0
    %110 = vmatpush.msra.mxu0 0.0
    %111 = vmatpush.msra.mxu0 0.0
    %112 = vmatpush.msra.mxu0 0.0
    %113 = vmatpush.msra.mxu0 0.0
    %114 = vmatpush.msra.mxu0 0.0
    %115 = vmatpush.msra.mxu0 0.0
    %116 = vmatpush.msra.mxu0 0.0
    %117 = vmatpush.msra.mxu0 0.0
    %118 = vmatpush.msra.mxu0 0.0
    %119 = vmatpush.msra.mxu0 %v100
    %120 = vmatmul.f32.gmra.mxu0 %v98
    %v121 = vpop.f32.mrf.mxu0
    %v122 = vadd.f32 %v72, %v121
    %123 = vdwg.mxu0
    %124 = vmatpush.msra.mxu0 0.0
    %125 = vmatpush.msra.mxu0 0.0
    %126 = vmatpush.msra.mxu0 0.0
    %127 = vmatpush.msra.mxu0 0.0
    %128 = vmatpush.msra.mxu0 0.0
    %129 = vmatpush.msra.mxu0 0.0
    %130 = vmatpush.msra.mxu0 0.0
    %131 = vmatpush.msra.mxu0 0.0
    %132 = vmatpush.msra.mxu0 0.0
    %133 = vmatpush.msra.mxu0 0.0
    %134 = vmatpush.msra.mxu0 0.0
    %135 = vmatpush.msra.mxu0 0.0
    %136 = vmatpush.msra.mxu0 0.0
    %137 = vmatpush.msra.mxu0 0.0
    %138 = vmatpush.msra.mxu0 0.0
    %139 = vmatpush.msra.mxu0 %v102
    %140 = vmatmul.f32.gmra.mxu0 %v98
    %v141 = vpop.f32.mrf.mxu0
    %v142 = vadd.f32 %v92, %v141
    %143 = vdwg.mxu0
    %s144 = scalar_lea.vmem %s3, 2
    %v145 = vld [vmem:[%s144] sm:$0x3]
    %v146 = vld [vmem:[%s1] sm:$0xff]
    %v147 = vld [vmem:[%s1 + $0x8] sm:$0xf]
    %150 = vst [vmem:[#allocation1] ss:$2 sm:$0xff] %v146
    %s151 = scalar_lea.vmem [#allocation1], 16
    %152 = vst [vmem:[%s151] ss:$2 sm:$0xff] %v147
    %v153 = vld.sshfl [vmem:[#allocation1] sm:$0xff pattern:$0x75316420]
    %v154 = vld.sshfl [vmem:[#allocation1 + $0x8] sm:$0xff pattern:$0x75316420]
    %v155 = vld.sshfl [vmem:[#allocation1 + $0x10] sm:$0xff pattern:$0x75316420]
    %156 = vrot.lane.b32.xlu0 %v153, 112
    %v157 = vpop.permute.xlu0 %156
    %158 = vrot.lane.b32.xlu0 %v154, 112
    %v159 = vpop.permute.xlu0 %158
    %160 = vrot.lane.b32.xlu0 %v155, 112
    %v161 = vpop.permute.xlu0 %160
    %v162 = vsel %vm42, %v157, %v159
    %v163 = vsel %vm42, %v159, %v161
    %v165 = vsel %vm45, %v145, 0
    %v167 = vsel %vm49, %v162, 0
    %v169 = vsel %vm49, %v163, 0
    %171 = vmatpush.msra.mxu0 0.0
    %172 = vmatpush.msra.mxu0 0.0
    %173 = vmatpush.msra.mxu0 0.0
    %174 = vmatpush.msra.mxu0 0.0
    %175 = vmatpush.msra.mxu0 0.0
    %176 = vmatpush.msra.mxu0 0.0
    %177 = vmatpush.msra.mxu0 0.0
    %178 = vmatpush.msra.mxu0 0.0
    %179 = vmatpush.msra.mxu0 0.0
    %180 = vmatpush.msra.mxu0 0.0
    %181 = vmatpush.msra.mxu0 0.0
    %182 = vmatpush.msra.mxu0 0.0
    %183 = vmatpush.msra.mxu0 0.0
    %184 = vmatpush.msra.mxu0 0.0
    %185 = vmatpush.msra.mxu0 0.0
    %186 = vmatpush.msra.mxu0 %v167
    %187 = vmatmul.f32.gmra.mxu0 %v165
    %v188 = vpop.f32.mrf.mxu0
    %v189 = vadd.f32 0.0, %v188
    %190 = vdwg.mxu0
    %191 = vmatpush.msra.mxu0 0.0
    %192 = vmatpush.msra.mxu0 0.0
    %193 = vmatpush.msra.mxu0 0.0
    %194 = vmatpush.msra.mxu0 0.0
    %195 = vmatpush.msra.mxu0 0.0
    %196 = vmatpush.msra.mxu0 0.0
    %197 = vmatpush.msra.mxu0 0.0
    %198 = vmatpush.msra.mxu0 0.0
    %199 = vmatpush.msra.mxu0 0.0
    %200 = vmatpush.msra.mxu0 0.0
    %201 = vmatpush.msra.mxu0 0.0
    %202 = vmatpush.msra.mxu0 0.0
    %203 = vmatpush.msra.mxu0 0.0
    %204 = vmatpush.msra.mxu0 0.0
    %205 = vmatpush.msra.mxu0 0.0
    %206 = vmatpush.msra.mxu0 %v169
    %207 = vmatmul.f32.gmra.mxu0 %v165
    %v208 = vpop.f32.mrf.mxu0
    %v209 = vadd.f32 0.0, %v208
    %210 = vdwg.mxu0
    %212 = vst [vmem:[#allocation1] ss:$2 sm:$0xff] %v24
    %v213 = vld.sshfl [vmem:[#allocation1] sm:$0xff pattern:$0x75316420]
    %v214 = vld.sshfl [vmem:[#allocation1 + $0x8] sm:$0xff pattern:$0x75316420]
    %v216 = vsel %vm45, %v23, 0
    %v218 = vsel %vm49, %v213, 0
    %v220 = vsel %vm49, %v214, 0
    %222 = vmatpush.msra.mxu0 0.0
    %223 = vmatpush.msra.mxu0 0.0
    %224 = vmatpush.msra.mxu0 0.0
    %225 = vmatpush.msra.mxu0 0.0
    %226 = vmatpush.msra.mxu0 0.0
    %227 = vmatpush.msra.mxu0 0.0
    %228 = vmatpush.msra.mxu0 0.0
    %229 = vmatpush.msra.mxu0 0.0
    %230 = vmatpush.msra.mxu0 0.0
    %231 = vmatpush.msra.mxu0 0.0
    %232 = vmatpush.msra.mxu0 0.0
    %233 = vmatpush.msra.mxu0 0.0
    %234 = vmatpush.msra.mxu0 0.0
    %235 = vmatpush.msra.mxu0 0.0
    %236 = vmatpush.msra.mxu0 0.0
    %237 = vmatpush.msra.mxu0 %v218
    %238 = vmatmul.f32.gmra.mxu0 %v216
    %v239 = vpop.f32.mrf.mxu0
    %v240 = vadd.f32 %v189, %v239
    %241 = vdwg.mxu0
    %242 = vmatpush.msra.mxu0 0.0
    %243 = vmatpush.msra.mxu0 0.0
    %244 = vmatpush.msra.mxu0 0.0
    %245 = vmatpush.msra.mxu0 0.0
    %246 = vmatpush.msra.mxu0 0.0
    %247 = vmatpush.msra.mxu0 0.0
    %248 = vmatpush.msra.mxu0 0.0
    %249 = vmatpush.msra.mxu0 0.0
    %250 = vmatpush.msra.mxu0 0.0
    %251 = vmatpush.msra.mxu0 0.0
    %252 = vmatpush.msra.mxu0 0.0
    %253 = vmatpush.msra.mxu0 0.0
    %254 = vmatpush.msra.mxu0 0.0
    %255 = vmatpush.msra.mxu0 0.0
    %256 = vmatpush.msra.mxu0 0.0
    %257 = vmatpush.msra.mxu0 %v220
    %258 = vmatmul.f32.gmra.mxu0 %v216
    %v259 = vpop.f32.mrf.mxu0
    %v260 = vadd.f32 %v209, %v259
    %261 = vdwg.mxu0
    %s262 = scalar_lea.vmem %s2, 4
    %v263 = vld [vmem:[%s262] sm:$0x3]
    %v264 = vld [vmem:[%s0] sm:$0xff]
    %v265 = vld [vmem:[%s0 + $0x8] sm:$0xf]
    %268 = vst [vmem:[#allocation1] ss:$2 sm:$0xff] %v264
    %s269 = scalar_lea.vmem [#allocation1], 16
    %270 = vst [vmem:[%s269] ss:$2 sm:$0xff] %v265
    %v271 = vld.sshfl [vmem:[#allocation1] sm:$0xff pattern:$0x75316420]
    %v272 = vld.sshfl [vmem:[#allocation1 + $0x8] sm:$0xff pattern:$0x75316420]
    %v273 = vld.sshfl [vmem:[#allocation1 + $0x10] sm:$0xff pattern:$0x75316420]
    %274 = vrot.lane.b32.xlu0 %v271, 96
    %v275 = vpop.permute.xlu0 %274
    %276 = vrot.lane.b32.xlu0 %v272, 96
    %v277 = vpop.permute.xlu0 %276
    %278 = vrot.lane.b32.xlu0 %v273, 96
    %v279 = vpop.permute.xlu0 %278
    %vm280 = vcmask 785408
    %v281 = vsel %vm280, %v275, %v277
    %v282 = vsel %vm280, %v277, %v279
    %v284 = vsel %vm45, %v263, 0
    %v286 = vsel %vm49, %v281, 0
    %v288 = vsel %vm49, %v282, 0
    %290 = vmatpush.msra.mxu0 0.0
    %291 = vmatpush.msra.mxu0 0.0
    %292 = vmatpush.msra.mxu0 0.0
    %293 = vmatpush.msra.mxu0 0.0
    %294 = vmatpush.msra.mxu0 0.0
    %295 = vmatpush.msra.mxu0 0.0
    %296 = vmatpush.msra.mxu0 0.0
    %297 = vmatpush.msra.mxu0 0.0
    %298 = vmatpush.msra.mxu0 0.0
    %299 = vmatpush.msra.mxu0 0.0
    %300 = vmatpush.msra.mxu0 0.0
    %301 = vmatpush.msra.mxu0 0.0
    %302 = vmatpush.msra.mxu0 0.0
    %303 = vmatpush.msra.mxu0 0.0
    %304 = vmatpush.msra.mxu0 0.0
    %305 = vmatpush.msra.mxu0 %v286
    %306 = vmatmul.f32.gmra.mxu0 %v284
    %v307 = vpop.f32.mrf.mxu0
    %v308 = vadd.f32 0.0, %v307
    %309 = vdwg.mxu0
    %310 = vmatpush.msra.mxu0 0.0
    %311 = vmatpush.msra.mxu0 0.0
    %312 = vmatpush.msra.mxu0 0.0
    %313 = vmatpush.msra.mxu0 0.0
    %314 = vmatpush.msra.mxu0 0.0
    %315 = vmatpush.msra.mxu0 0.0
    %316 = vmatpush.msra.mxu0 0.0
    %317 = vmatpush.msra.mxu0 0.0
    %318 = vmatpush.msra.mxu0 0.0
    %319 = vmatpush.msra.mxu0 0.0
    %320 = vmatpush.msra.mxu0 0.0
    %321 = vmatpush.msra.mxu0 0.0
    %322 = vmatpush.msra.mxu0 0.0
    %323 = vmatpush.msra.mxu0 0.0
    %324 = vmatpush.msra.mxu0 0.0
    %325 = vmatpush.msra.mxu0 %v288
    %326 = vmatmul.f32.gmra.mxu0 %v284
    %v327 = vpop.f32.mrf.mxu0
    %v328 = vadd.f32 0.0, %v327
    %329 = vdwg.mxu0
    %v330 = vadd.f32 %v122, %v308
    %v331 = vadd.f32 %v142, %v328
    %s332 = scalar_lea.vmem %s3, 4
    %v333 = vld [vmem:[%s332] sm:$0x3]
    %v334 = vld [vmem:[%s1] sm:$0xff]
    %v335 = vld [vmem:[%s1 + $0x8] sm:$0xf]
    %338 = vst [vmem:[#allocation1] ss:$2 sm:$0xff] %v334
    %s339 = scalar_lea.vmem [#allocation1], 16
    %340 = vst [vmem:[%s339] ss:$2 sm:$0xff] %v335
    %v341 = vld.sshfl [vmem:[#allocation1] sm:$0xff pattern:$0x75316420]
    %v342 = vld.sshfl [vmem:[#allocation1 + $0x8] sm:$0xff pattern:$0x75316420]
    %v343 = vld.sshfl [vmem:[#allocation1 + $0x10] sm:$0xff pattern:$0x75316420]
    %344 = vrot.lane.b32.xlu0 %v341, 96
    %v345 = vpop.permute.xlu0 %344
    %346 = vrot.lane.b32.xlu0 %v342, 96
    %v347 = vpop.permute.xlu0 %346
    %348 = vrot.lane.b32.xlu0 %v343, 96
    %v349 = vpop.permute.xlu0 %348
    %v350 = vsel %vm280, %v345, %v347
    %v351 = vsel %vm280, %v347, %v349
    %v353 = vsel %vm45, %v333, 0
    %v355 = vsel %vm49, %v350, 0
    %v357 = vsel %vm49, %v351, 0
    %359 = vmatpush.msra.mxu0 0.0
    %360 = vmatpush.msra.mxu0 0.0
    %361 = vmatpush.msra.mxu0 0.0
    %362 = vmatpush.msra.mxu0 0.0
    %363 = vmatpush.msra.mxu0 0.0
    %364 = vmatpush.msra.mxu0 0.0
    %365 = vmatpush.msra.mxu0 0.0
    %366 = vmatpush.msra.mxu0 0.0
    %367 = vmatpush.msra.mxu0 0.0
    %368 = vmatpush.msra.mxu0 0.0
    %369 = vmatpush.msra.mxu0 0.0
    %370 = vmatpush.msra.mxu0 0.0
    %371 = vmatpush.msra.mxu0 0.0
    %372 = vmatpush.msra.mxu0 0.0
    %373 = vmatpush.msra.mxu0 0.0
    %374 = vmatpush.msra.mxu0 %v355
    %375 = vmatmul.f32.gmra.mxu0 %v353
    %v376 = vpop.f32.mrf.mxu0
    %v377 = vadd.f32 0.0, %v376
    %378 = vdwg.mxu0
    %379 = vmatpush.msra.mxu0 0.0
    %380 = vmatpush.msra.mxu0 0.0
    %381 = vmatpush.msra.mxu0 0.0
    %382 = vmatpush.msra.mxu0 0.0
    %383 = vmatpush.msra.mxu0 0.0
    %384 = vmatpush.msra.mxu0 0.0
    %385 = vmatpush.msra.mxu0 0.0
    %386 = vmatpush.msra.mxu0 0.0
    %387 = vmatpush.msra.mxu0 0.0
    %388 = vmatpush.msra.mxu0 0.0
    %389 = vmatpush.msra.mxu0 0.0
    %390 = vmatpush.msra.mxu0 0.0
    %391 = vmatpush.msra.mxu0 0.0
    %392 = vmatpush.msra.mxu0 0.0
    %393 = vmatpush.msra.mxu0 0.0
    %394 = vmatpush.msra.mxu0 %v357
    %395 = vmatmul.f32.gmra.mxu0 %v353
    %v396 = vpop.f32.mrf.mxu0
    %v397 = vadd.f32 0.0, %v396
    %398 = vdwg.mxu0
    %v399 = vadd.f32 %v240, %v377
    %v400 = vadd.f32 %v260, %v397
    %s401 = scalar_lea.vmem %s2, 6
    %v402 = vld [vmem:[%s401] sm:$0x3]
    %v403 = vld [vmem:[%s0] sm:$0xff]
    %v404 = vld [vmem:[%s0 + $0x8] sm:$0xf]
    %407 = vst [vmem:[#allocation1] ss:$2 sm:$0xff] %v403
    %s408 = scalar_lea.vmem [#allocation1], 16
    %409 = vst [vmem:[%s408] ss:$2 sm:$0xff] %v404
    %v410 = vld.sshfl [vmem:[#allocation1] sm:$0xff pattern:$0x75316420]
    %v411 = vld.sshfl [vmem:[#allocation1 + $0x8] sm:$0xff pattern:$0x75316420]
    %v412 = vld.sshfl [vmem:[#allocation1 + $0x10] sm:$0xff pattern:$0x75316420]
    %413 = vrot.lane.b32.xlu0 %v410, 80
    %v414 = vpop.permute.xlu0 %413
    %415 = vrot.lane.b32.xlu0 %v411, 80
    %v416 = vpop.permute.xlu0 %415
    %417 = vrot.lane.b32.xlu0 %v412, 80
    %v418 = vpop.permute.xlu0 %417
    %vm419 = vcmask 654336
    %v420 = vsel %vm419, %v414, %v416
    %v421 = vsel %vm419, %v416, %v418
    %v423 = vsel %vm45, %v402, 0
    %v425 = vsel %vm49, %v420, 0
    %v427 = vsel %vm49, %v421, 0
    %429 = vmatpush.msra.mxu0 0.0
    %430 = vmatpush.msra.mxu0 0.0
    %431 = vmatpush.msra.mxu0 0.0
    %432 = vmatpush.msra.mxu0 0.0
    %433 = vmatpush.msra.mxu0 0.0
    %434 = vmatpush.msra.mxu0 0.0
    %435 = vmatpush.msra.mxu0 0.0
    %436 = vmatpush.msra.mxu0 0.0
    %437 = vmatpush.msra.mxu0 0.0
    %438 = vmatpush.msra.mxu0 0.0
    %439 = vmatpush.msra.mxu0 0.0
    %440 = vmatpush.msra.mxu0 0.0
    %441 = vmatpush.msra.mxu0 0.0
    %442 = vmatpush.msra.mxu0 0.0
    %443 = vmatpush.msra.mxu0 0.0
    %444 = vmatpush.msra.mxu0 %v425
    %445 = vmatmul.f32.gmra.mxu0 %v423
    %v446 = vpop.f32.mrf.mxu0
    %v447 = vadd.f32 0.0, %v446
    %448 = vdwg.mxu0
    %449 = vmatpush.msra.mxu0 0.0
    %450 = vmatpush.msra.mxu0 0.0
    %451 = vmatpush.msra.mxu0 0.0
    %452 = vmatpush.msra.mxu0 0.0
    %453 = vmatpush.msra.mxu0 0.0
    %454 = vmatpush.msra.mxu0 0.0
    %455 = vmatpush.msra.mxu0 0.0
    %456 = vmatpush.msra.mxu0 0.0
    %457 = vmatpush.msra.mxu0 0.0
    %458 = vmatpush.msra.mxu0 0.0
    %459 = vmatpush.msra.mxu0 0.0
    %460 = vmatpush.msra.mxu0 0.0
    %461 = vmatpush.msra.mxu0 0.0
    %462 = vmatpush.msra.mxu0 0.0
    %463 = vmatpush.msra.mxu0 0.0
    %464 = vmatpush.msra.mxu0 %v427
    %465 = vmatmul.f32.gmra.mxu0 %v423
    %v466 = vpop.f32.mrf.mxu0
    %v467 = vadd.f32 0.0, %v466
    %468 = vdwg.mxu0
    %v469 = vadd.f32 %v330, %v447
    %v470 = vadd.f32 %v331, %v467
    %s471 = scalar_lea.vmem %s3, 6
    %v472 = vld [vmem:[%s471] sm:$0x3]
    %v473 = vld [vmem:[%s1] sm:$0xff]
    %v474 = vld [vmem:[%s1 + $0x8] sm:$0xf]
    %477 = vst [vmem:[#allocation1] ss:$2 sm:$0xff] %v473
    %s478 = scalar_lea.vmem [#allocation1], 16
    %479 = vst [vmem:[%s478] ss:$2 sm:$0xff] %v474
    %v480 = vld.sshfl [vmem:[#allocation1] sm:$0xff pattern:$0x75316420]
    %v481 = vld.sshfl [vmem:[#allocation1 + $0x8] sm:$0xff pattern:$0x75316420]
    %v482 = vld.sshfl [vmem:[#allocation1 + $0x10] sm:$0xff pattern:$0x75316420]
    %483 = vrot.lane.b32.xlu0 %v480, 80
    %v484 = vpop.permute.xlu0 %483
    %485 = vrot.lane.b32.xlu0 %v481, 80
    %v486 = vpop.permute.xlu0 %485
    %487 = vrot.lane.b32.xlu0 %v482, 80
    %v488 = vpop.permute.xlu0 %487
    %v489 = vsel %vm419, %v484, %v486
    %v490 = vsel %vm419, %v486, %v488
    %v492 = vsel %vm45, %v472, 0
    %v494 = vsel %vm49, %v489, 0
    %v496 = vsel %vm49, %v490, 0
    %498 = vmatpush.msra.mxu0 0.0
    %499 = vmatpush.msra.mxu0 0.0
    %500 = vmatpush.msra.mxu0 0.0
    %501 = vmatpush.msra.mxu0 0.0
    %502 = vmatpush.msra.mxu0 0.0
    %503 = vmatpush.msra.mxu0 0.0
    %504 = vmatpush.msra.mxu0 0.0
    %505 = vmatpush.msra.mxu0 0.0
    %506 = vmatpush.msra.mxu0 0.0
    %507 = vmatpush.msra.mxu0 0.0
    %508 = vmatpush.msra.mxu0 0.0
    %509 = vmatpush.msra.mxu0 0.0
    %510 = vmatpush.msra.mxu0 0.0
    %511 = vmatpush.msra.mxu0 0.0
    %512 = vmatpush.msra.mxu0 0.0
    %513 = vmatpush.msra.mxu0 %v494
    %514 = vmatmul.f32.gmra.mxu0 %v492
    %v515 = vpop.f32.mrf.mxu0
    %v516 = vadd.f32 0.0, %v515
    %517 = vdwg.mxu0
    %518 = vmatpush.msra.mxu0 0.0
    %519 = vmatpush.msra.mxu0 0.0
    %520 = vmatpush.msra.mxu0 0.0
    %521 = vmatpush.msra.mxu0 0.0
    %522 = vmatpush.msra.mxu0 0.0
    %523 = vmatpush.msra.mxu0 0.0
    %524 = vmatpush.msra.mxu0 0.0
    %525 = vmatpush.msra.mxu0 0.0
    %526 = vmatpush.msra.mxu0 0.0
    %527 = vmatpush.msra.mxu0 0.0
    %528 = vmatpush.msra.mxu0 0.0
    %529 = vmatpush.msra.mxu0 0.0
    %530 = vmatpush.msra.mxu0 0.0
    %531 = vmatpush.msra.mxu0 0.0
    %532 = vmatpush.msra.mxu0 0.0
    %533 = vmatpush.msra.mxu0 %v496
    %534 = vmatmul.f32.gmra.mxu0 %v492
    %v535 = vpop.f32.mrf.mxu0
    %v536 = vadd.f32 0.0, %v535
    %537 = vdwg.mxu0
    %v538 = vadd.f32 %v399, %v516
    %v539 = vadd.f32 %v400, %v536
    %s540 = scalar_lea.vmem %s2, 8
    %v541 = vld [vmem:[%s540] sm:$0x3]
    %v542 = vld [vmem:[%s0] sm:$0xff]
    %v543 = vld [vmem:[%s0 + $0x8] sm:$0xf]
    %546 = vst [vmem:[#allocation1] ss:$2 sm:$0xff] %v542
    %s547 = scalar_lea.vmem [#allocation1], 16
    %548 = vst [vmem:[%s547] ss:$2 sm:$0xff] %v543
    %v549 = vld.sshfl [vmem:[#allocation1] sm:$0xff pattern:$0x75316420]
    %v550 = vld.sshfl [vmem:[#allocation1 + $0x8] sm:$0xff pattern:$0x75316420]
    %v551 = vld.sshfl [vmem:[#allocation1 + $0x10] sm:$0xff pattern:$0x75316420]
    %552 = vrot.lane.b32.xlu0 %v549, 64
    %v553 = vpop.permute.xlu0 %552
    %554 = vrot.lane.b32.xlu0 %v550, 64
    %v555 = vpop.permute.xlu0 %554
    %556 = vrot.lane.b32.xlu0 %v551, 64
    %v557 = vpop.permute.xlu0 %556
    %vm558 = vcmask 523264
    %v559 = vsel %vm558, %v553, %v555
    %v560 = vsel %vm558, %v555, %v557
    %v562 = vsel %vm45, %v541, 0
    %v564 = vsel %vm49, %v559, 0
    %v566 = vsel %vm49, %v560, 0
    %568 = vmatpush.msra.mxu0 0.0
    %569 = vmatpush.msra.mxu0 0.0
    %570 = vmatpush.msra.mxu0 0.0
    %571 = vmatpush.msra.mxu0 0.0
    %572 = vmatpush.msra.mxu0 0.0
    %573 = vmatpush.msra.mxu0 0.0
    %574 = vmatpush.msra.mxu0 0.0
    %575 = vmatpush.msra.mxu0 0.0
    %576 = vmatpush.msra.mxu0 0.0
    %577 = vmatpush.msra.mxu0 0.0
    %578 = vmatpush.msra.mxu0 0.0
    %579 = vmatpush.msra.mxu0 0.0
    %580 = vmatpush.msra.mxu0 0.0
    %581 = vmatpush.msra.mxu0 0.0
    %582 = vmatpush.msra.mxu0 0.0
    %583 = vmatpush.msra.mxu0 %v564
    %584 = vmatmul.f32.gmra.mxu0 %v562
    %v585 = vpop.f32.mrf.mxu0
    %v586 = vadd.f32 0.0, %v585
    %587 = vdwg.mxu0
    %588 = vmatpush.msra.mxu0 0.0
    %589 = vmatpush.msra.mxu0 0.0
    %590 = vmatpush.msra.mxu0 0.0
    %591 = vmatpush.msra.mxu0 0.0
    %592 = vmatpush.msra.mxu0 0.0
    %593 = vmatpush.msra.mxu0 0.0
    %594 = vmatpush.msra.mxu0 0.0
    %595 = vmatpush.msra.mxu0 0.0
    %596 = vmatpush.msra.mxu0 0.0
    %597 = vmatpush.msra.mxu0 0.0
    %598 = vmatpush.msra.mxu0 0.0
    %599 = vmatpush.msra.mxu0 0.0
    %600 = vmatpush.msra.mxu0 0.0
    %601 = vmatpush.msra.mxu0 0.0
    %602 = vmatpush.msra.mxu0 0.0
    %603 = vmatpush.msra.mxu0 %v566
    %604 = vmatmul.f32.gmra.mxu0 %v562
    %v605 = vpop.f32.mrf.mxu0
    %v606 = vadd.f32 0.0, %v605
    %607 = vdwg.mxu0
    %v608 = vadd.f32 %v469, %v586
    %v609 = vadd.f32 %v470, %v606
    %s610 = scalar_lea.vmem %s3, 8
    %v611 = vld [vmem:[%s610] sm:$0x3]
    %v612 = vld [vmem:[%s1] sm:$0xff]
    %v613 = vld [vmem:[%s1 + $0x8] sm:$0xf]
    %616 = vst [vmem:[#allocation1] ss:$2 sm:$0xff] %v612
    %s617 = scalar_lea.vmem [#allocation1], 16
    %618 = vst [vmem:[%s617] ss:$2 sm:$0xff] %v613
    %v619 = vld.sshfl [vmem:[#allocation1] sm:$0xff pattern:$0x75316420]
    %v620 = vld.sshfl [vmem:[#allocation1 + $0x8] sm:$0xff pattern:$0x75316420]
    %v621 = vld.sshfl [vmem:[#allocation1 + $0x10] sm:$0xff pattern:$0x75316420]
    %622 = vrot.lane.b32.xlu0 %v619, 64
    %v623 = vpop.permute.xlu0 %622
    %624 = vrot.lane.b32.xlu0 %v620, 64
    %v625 = vpop.permute.xlu0 %624
    %626 = vrot.lane.b32.xlu0 %v621, 64
    %v627 = vpop.permute.xlu0 %626
    %v628 = vsel %vm558, %v623, %v625
    %v629 = vsel %vm558, %v625, %v627
    %v631 = vsel %vm45, %v611, 0
    %v633 = vsel %vm49, %v628, 0
    %v635 = vsel %vm49, %v629, 0
    %637 = vmatpush.msra.mxu0 0.0
    %638 = vmatpush.msra.mxu0 0.0
    %639 = vmatpush.msra.mxu0 0.0
    %640 = vmatpush.msra.mxu0 0.0
    %641 = vmatpush.msra.mxu0 0.0
    %642 = vmatpush.msra.mxu0 0.0
    %643 = vmatpush.msra.mxu0 0.0
    %644 = vmatpush.msra.mxu0 0.0
    %645 = vmatpush.msra.mxu0 0.0
    %646 = vmatpush.msra.mxu0 0.0
    %647 = vmatpush.msra.mxu0 0.0
    %648 = vmatpush.msra.mxu0 0.0
    %649 = vmatpush.msra.mxu0 0.0
    %650 = vmatpush.msra.mxu0 0.0
    %651 = vmatpush.msra.mxu0 0.0
    %652 = vmatpush.msra.mxu0 %v633
    %653 = vmatmul.f32.gmra.mxu0 %v631
    %v654 = vpop.f32.mrf.mxu0
    %v655 = vadd.f32 0.0, %v654
    %656 = vdwg.mxu0
    %657 = vmatpush.msra.mxu0 0.0
    %658 = vmatpush.msra.mxu0 0.0
    %659 = vmatpush.msra.mxu0 0.0
    %660 = vmatpush.msra.mxu0 0.0
    %661 = vmatpush.msra.mxu0 0.0
    %662 = vmatpush.msra.mxu0 0.0
    %663 = vmatpush.msra.mxu0 0.0
    %664 = vmatpush.msra.mxu0 0.0
    %665 = vmatpush.msra.mxu0 0.0
    %666 = vmatpush.msra.mxu0 0.0
    %667 = vmatpush.msra.mxu0 0.0
    %668 = vmatpush.msra.mxu0 0.0
    %669 = vmatpush.msra.mxu0 0.0
    %670 = vmatpush.msra.mxu0 0.0
    %671 = vmatpush.msra.mxu0 0.0
    %672 = vmatpush.msra.mxu0 %v635
    %673 = vmatmul.f32.gmra.mxu0 %v631
    %v674 = vpop.f32.mrf.mxu0
    %v675 = vadd.f32 0.0, %v674
    %676 = vdwg.mxu0
    %v677 = vadd.f32 %v538, %v655
    %v678 = vadd.f32 %v539, %v675
    %s679 = scalar_lea.vmem %s2, 10
    %v680 = vld [vmem:[%s679] sm:$0x3]
    %v681 = vld [vmem:[%s0] sm:$0xff]
    %v682 = vld [vmem:[%s0 + $0x8] sm:$0xf]
    %685 = vst [vmem:[#allocation1] ss:$2 sm:$0xff] %v681
    %s686 = scalar_lea.vmem [#allocation1], 16
    %687 = vst [vmem:[%s686] ss:$2 sm:$0xff] %v682
    %v688 = vld.sshfl [vmem:[#allocation1] sm:$0xff pattern:$0x75316420]
    %v689 = vld.sshfl [vmem:[#allocation1 + $0x8] sm:$0xff pattern:$0x75316420]
    %v690 = vld.sshfl [vmem:[#allocation1 + $0x10] sm:$0xff pattern:$0x75316420]
    %691 = vrot.lane.b32.xlu0 %v688, 48
    %v692 = vpop.permute.xlu0 %691
    %693 = vrot.lane.b32.xlu0 %v689, 48
    %v694 = vpop.permute.xlu0 %693
    %695 = vrot.lane.b32.xlu0 %v690, 48
    %v696 = vpop.permute.xlu0 %695
    %vm697 = vcmask 392192
    %v698 = vsel %vm697, %v692, %v694
    %v699 = vsel %vm697, %v694, %v696
    %v701 = vsel %vm45, %v680, 0
    %v703 = vsel %vm49, %v698, 0
    %v705 = vsel %vm49, %v699, 0
    %707 = vmatpush.msra.mxu0 0.0
    %708 = vmatpush.msra.mxu0 0.0
    %709 = vmatpush.msra.mxu0 0.0
    %710 = vmatpush.msra.mxu0 0.0
    %711 = vmatpush.msra.mxu0 0.0
    %712 = vmatpush.msra.mxu0 0.0
    %713 = vmatpush.msra.mxu0 0.0
    %714 = vmatpush.msra.mxu0 0.0
    %715 = vmatpush.msra.mxu0 0.0
    %716 = vmatpush.msra.mxu0 0.0
    %717 = vmatpush.msra.mxu0 0.0
    %718 = vmatpush.msra.mxu0 0.0
    %719 = vmatpush.msra.mxu0 0.0
    %720 = vmatpush.msra.mxu0 0.0
    %721 = vmatpush.msra.mxu0 0.0
    %722 = vmatpush.msra.mxu0 %v703
    %723 = vmatmul.f32.gmra.mxu0 %v701
    %v724 = vpop.f32.mrf.mxu0
    %v725 = vadd.f32 0.0, %v724
    %726 = vdwg.mxu0
    %727 = vmatpush.msra.mxu0 0.0
    %728 = vmatpush.msra.mxu0 0.0
    %729 = vmatpush.msra.mxu0 0.0
    %730 = vmatpush.msra.mxu0 0.0
    %731 = vmatpush.msra.mxu0 0.0
    %732 = vmatpush.msra.mxu0 0.0
    %733 = vmatpush.msra.mxu0 0.0
    %734 = vmatpush.msra.mxu0 0.0
    %735 = vmatpush.msra.mxu0 0.0
    %736 = vmatpush.msra.mxu0 0.0
    %737 = vmatpush.msra.mxu0 0.0
    %738 = vmatpush.msra.mxu0 0.0
    %739 = vmatpush.msra.mxu0 0.0
    %740 = vmatpush.msra.mxu0 0.0
    %741 = vmatpush.msra.mxu0 0.0
    %742 = vmatpush.msra.mxu0 %v705
    %743 = vmatmul.f32.gmra.mxu0 %v701
    %v744 = vpop.f32.mrf.mxu0
    %v745 = vadd.f32 0.0, %v744
    %746 = vdwg.mxu0
    %v747 = vadd.f32 %v608, %v725
    %v748 = vadd.f32 %v609, %v745
    %s749 = scalar_lea.vmem %s3, 10
    %v750 = vld [vmem:[%s749] sm:$0x3]
    %v751 = vld [vmem:[%s1] sm:$0xff]
    %v752 = vld [vmem:[%s1 + $0x8] sm:$0xf]
    %755 = vst [vmem:[#allocation1] ss:$2 sm:$0xff] %v751
    %s756 = scalar_lea.vmem [#allocation1], 16
    %757 = vst [vmem:[%s756] ss:$2 sm:$0xff] %v752
    %v758 = vld.sshfl [vmem:[#allocation1] sm:$0xff pattern:$0x75316420]
    %v759 = vld.sshfl [vmem:[#allocation1 + $0x8] sm:$0xff pattern:$0x75316420]
    %v760 = vld.sshfl [vmem:[#allocation1 + $0x10] sm:$0xff pattern:$0x75316420]
    %761 = vrot.lane.b32.xlu0 %v758, 48
    %v762 = vpop.permute.xlu0 %761
    %763 = vrot.lane.b32.xlu0 %v759, 48
    %v764 = vpop.permute.xlu0 %763
    %765 = vrot.lane.b32.xlu0 %v760, 48
    %v766 = vpop.permute.xlu0 %765
    %v767 = vsel %vm697, %v762, %v764
    %v768 = vsel %vm697, %v764, %v766
    %v770 = vsel %vm45, %v750, 0
    %v772 = vsel %vm49, %v767, 0
    %v774 = vsel %vm49, %v768, 0
    %776 = vmatpush.msra.mxu0 0.0
    %777 = vmatpush.msra.mxu0 0.0
    %778 = vmatpush.msra.mxu0 0.0
    %779 = vmatpush.msra.mxu0 0.0
    %780 = vmatpush.msra.mxu0 0.0
    %781 = vmatpush.msra.mxu0 0.0
    %782 = vmatpush.msra.mxu0 0.0
    %783 = vmatpush.msra.mxu0 0.0
    %784 = vmatpush.msra.mxu0 0.0
    %785 = vmatpush.msra.mxu0 0.0
    %786 = vmatpush.msra.mxu0 0.0
    %787 = vmatpush.msra.mxu0 0.0
    %788 = vmatpush.msra.mxu0 0.0
    %789 = vmatpush.msra.mxu0 0.0
    %790 = vmatpush.msra.mxu0 0.0
    %791 = vmatpush.msra.mxu0 %v772
    %792 = vmatmul.f32.gmra.mxu0 %v770
    %v793 = vpop.f32.mrf.mxu0
    %v794 = vadd.f32 0.0, %v793
    %795 = vdwg.mxu0
    %796 = vmatpush.msra.mxu0 0.0
    %797 = vmatpush.msra.mxu0 0.0
    %798 = vmatpush.msra.mxu0 0.0
    %799 = vmatpush.msra.mxu0 0.0
    %800 = vmatpush.msra.mxu0 0.0
    %801 = vmatpush.msra.mxu0 0.0
    %802 = vmatpush.msra.mxu0 0.0
    %803 = vmatpush.msra.mxu0 0.0
    %804 = vmatpush.msra.mxu0 0.0
    %805 = vmatpush.msra.mxu0 0.0
    %806 = vmatpush.msra.mxu0 0.0
    %807 = vmatpush.msra.mxu0 0.0
    %808 = vmatpush.msra.mxu0 0.0
    %809 = vmatpush.msra.mxu0 0.0
    %810 = vmatpush.msra.mxu0 0.0
    %811 = vmatpush.msra.mxu0 %v774
    %812 = vmatmul.f32.gmra.mxu0 %v770
    %v813 = vpop.f32.mrf.mxu0
    %v814 = vadd.f32 0.0, %v813
    %815 = vdwg.mxu0
    %v816 = vadd.f32 %v677, %v794
    %v817 = vadd.f32 %v678, %v814
    %s818 = scalar_lea.vmem %s2, 12
    %v819 = vld [vmem:[%s818] sm:$0x3]
    %v820 = vld [vmem:[%s0] sm:$0xff]
    %v821 = vld [vmem:[%s0 + $0x8] sm:$0xf]
    %824 = vst [vmem:[#allocation1] ss:$2 sm:$0xff] %v820
    %s825 = scalar_lea.vmem [#allocation1], 16
    %826 = vst [vmem:[%s825] ss:$2 sm:$0xff] %v821
    %v827 = vld.sshfl [vmem:[#allocation1] sm:$0xff pattern:$0x75316420]
    %v828 = vld.sshfl [vmem:[#allocation1 + $0x8] sm:$0xff pattern:$0x75316420]
    %v829 = vld.sshfl [vmem:[#allocation1 + $0x10] sm:$0xff pattern:$0x75316420]
    %830 = vrot.lane.b32.xlu0 %v827, 32
    %v831 = vpop.permute.xlu0 %830
    %832 = vrot.lane.b32.xlu0 %v828, 32
    %v833 = vpop.permute.xlu0 %832
    %834 = vrot.lane.b32.xlu0 %v829, 32
    %v835 = vpop.permute.xlu0 %834
    %vm836 = vcmask 261120
    %v837 = vsel %vm836, %v831, %v833
    %v838 = vsel %vm836, %v833, %v835
    %v840 = vsel %vm45, %v819, 0
    %v842 = vsel %vm49, %v837, 0
    %v844 = vsel %vm49, %v838, 0
    %846 = vmatpush.msra.mxu0 0.0
    %847 = vmatpush.msra.mxu0 0.0
    %848 = vmatpush.msra.mxu0 0.0
    %849 = vmatpush.msra.mxu0 0.0
    %850 = vmatpush.msra.mxu0 0.0
    %851 = vmatpush.msra.mxu0 0.0
    %852 = vmatpush.msra.mxu0 0.0
    %853 = vmatpush.msra.mxu0 0.0
    %854 = vmatpush.msra.mxu0 0.0
    %855 = vmatpush.msra.mxu0 0.0
    %856 = vmatpush.msra.mxu0 0.0
    %857 = vmatpush.msra.mxu0 0.0
    %858 = vmatpush.msra.mxu0 0.0
    %859 = vmatpush.msra.mxu0 0.0
    %860 = vmatpush.msra.mxu0 0.0
    %861 = vmatpush.msra.mxu0 %v842
    %862 = vmatmul.f32.gmra.mxu0 %v840
    %v863 = vpop.f32.mrf.mxu0
    %v864 = vadd.f32 0.0, %v863
    %865 = vdwg.mxu0
    %866 = vmatpush.msra.mxu0 0.0
    %867 = vmatpush.msra.mxu0 0.0
    %868 = vmatpush.msra.mxu0 0.0
    %869 = vmatpush.msra.mxu0 0.0
    %870 = vmatpush.msra.mxu0 0.0
    %871 = vmatpush.msra.mxu0 0.0
    %872 = vmatpush.msra.mxu0 0.0
    %873 = vmatpush.msra.mxu0 0.0
    %874 = vmatpush.msra.mxu0 0.0
    %875 = vmatpush.msra.mxu0 0.0
    %876 = vmatpush.msra.mxu0 0.0
    %877 = vmatpush.msra.mxu0 0.0
    %878 = vmatpush.msra.mxu0 0.0
    %879 = vmatpush.msra.mxu0 0.0
    %880 = vmatpush.msra.mxu0 0.0
    %881 = vmatpush.msra.mxu0 %v844
    %882 = vmatmul.f32.gmra.mxu0 %v840
    %v883 = vpop.f32.mrf.mxu0
    %v884 = vadd.f32 0.0, %v883
    %885 = vdwg.mxu0
    %v886 = vadd.f32 %v747, %v864
    %v887 = vadd.f32 %v748, %v884
    %s888 = scalar_lea.vmem %s3, 12
    %v889 = vld [vmem:[%s888] sm:$0x3]
    %v890 = vld [vmem:[%s1] sm:$0xff]
    %v891 = vld [vmem:[%s1 + $0x8] sm:$0xf]
    %894 = vst [vmem:[#allocation1] ss:$2 sm:$0xff] %v890
    %s895 = scalar_lea.vmem [#allocation1], 16
    %896 = vst [vmem:[%s895] ss:$2 sm:$0xff] %v891
    %v897 = vld.sshfl [vmem:[#allocation1] sm:$0xff pattern:$0x75316420]
    %v898 = vld.sshfl [vmem:[#allocation1 + $0x8] sm:$0xff pattern:$0x75316420]
    %v899 = vld.sshfl [vmem:[#allocation1 + $0x10] sm:$0xff pattern:$0x75316420]
    %900 = vrot.lane.b32.xlu0 %v897, 32
    %v901 = vpop.permute.xlu0 %900
    %902 = vrot.lane.b32.xlu0 %v898, 32
    %v903 = vpop.permute.xlu0 %902
    %904 = vrot.lane.b32.xlu0 %v899, 32
    %v905 = vpop.permute.xlu0 %904
    %v906 = vsel %vm836, %v901, %v903
    %v907 = vsel %vm836, %v903, %v905
    %v909 = vsel %vm45, %v889, 0
    %v911 = vsel %vm49, %v906, 0
    %v913 = vsel %vm49, %v907, 0
    %915 = vmatpush.msra.mxu0 0.0
    %916 = vmatpush.msra.mxu0 0.0
    %917 = vmatpush.msra.mxu0 0.0
    %918 = vmatpush.msra.mxu0 0.0
    %919 = vmatpush.msra.mxu0 0.0
    %920 = vmatpush.msra.mxu0 0.0
    %921 = vmatpush.msra.mxu0 0.0
    %922 = vmatpush.msra.mxu0 0.0
    %923 = vmatpush.msra.mxu0 0.0
    %924 = vmatpush.msra.mxu0 0.0
    %925 = vmatpush.msra.mxu0 0.0
    %926 = vmatpush.msra.mxu0 0.0
    %927 = vmatpush.msra.mxu0 0.0
    %928 = vmatpush.msra.mxu0 0.0
    %929 = vmatpush.msra.mxu0 0.0
    %930 = vmatpush.msra.mxu0 %v911
    %931 = vmatmul.f32.gmra.mxu0 %v909
    %v932 = vpop.f32.mrf.mxu0
    %v933 = vadd.f32 0.0, %v932
    %934 = vdwg.mxu0
    %935 = vmatpush.msra.mxu0 0.0
    %936 = vmatpush.msra.mxu0 0.0
    %937 = vmatpush.msra.mxu0 0.0
    %938 = vmatpush.msra.mxu0 0.0
    %939 = vmatpush.msra.mxu0 0.0
    %940 = vmatpush.msra.mxu0 0.0
    %941 = vmatpush.msra.mxu0 0.0
    %942 = vmatpush.msra.mxu0 0.0
    %943 = vmatpush.msra.mxu0 0.0
    %944 = vmatpush.msra.mxu0 0.0
    %945 = vmatpush.msra.mxu0 0.0
    %946 = vmatpush.msra.mxu0 0.0
    %947 = vmatpush.msra.mxu0 0.0
    %948 = vmatpush.msra.mxu0 0.0
    %949 = vmatpush.msra.mxu0 0.0
    %950 = vmatpush.msra.mxu0 %v913
    %951 = vmatmul.f32.gmra.mxu0 %v909
    %v952 = vpop.f32.mrf.mxu0
    %v953 = vadd.f32 0.0, %v952
    %954 = vdwg.mxu0
    %v955 = vadd.f32 %v816, %v933
    %v956 = vadd.f32 %v817, %v953
    %v959 = vrot.slane %v955, 6
    %v960 = vrot.slane %v956, 6
    %vm963 = vcmask 1041408
    %v964 = vsel %vm963, %v886, %v959
    %v965 = vsel %vm963, %v887, %v960
    %v966 = vld [vmem:[%s4] sm:$0xf]
    %968 = vset.pattern.permute.xlu0 0
    %969 = vperm.xlu0 %968, %v966
    %v970 = vpop.permute.xlu0 %969
    %v972 = vadd.f32 %v964, %v970
    %v973 = vadd.f32 %v965, %v970
    %v974 = vsub.f32 0.0, %v972
    %v975 = vsub.f32 0.0, %v973
    %v976 = vmul.f32 %v974, 1.442695
    %v977 = vpow.pop %v976
    %v978 = vmul.f32 %v975, 1.442695
    %v979 = vpow.pop %v978
    %v980 = vadd.f32 %v977, 1.0
    %v981 = vadd.f32 %v979, 1.0
    %v982 = vrcp.pop %v980
    %v983 = vrcp.pop %v981
    %v984 = vmul.f32 %v982, 2.0
    %v985 = vmul.f32 %v983, 2.0
    %v988 = vrot.slane %v985, 4
    %v989 = vsel %vm49, %v984, %v988
    %991 = vst [vmem:[#allocation2] sm:$0xff] %v989
    %v992 = vld [vmem:[%s2] sm:$0x3]
    %s993 = scalar_lea.vmem %s0, 12
    %v994 = vld [vmem:[%s993] sm:$0xff]
    %v995 = vld [vmem:[%s3] sm:$0x3]
    %s996 = scalar_lea.vmem %s1, 12
    %v997 = vld [vmem:[%s996] sm:$0xff]
    %v998 = vld [vmem:[%s25] sm:$0x3]
    %v999 = vld [vmem:[%s993 + $0x8] sm:$0xf]
    %1002 = vst [vmem:[#allocation1] ss:$2 sm:$0xff] %v994
    %s1003 = scalar_lea.vmem [#allocation1], 16
    %1004 = vst [vmem:[%s1003] ss:$2 sm:$0xff] %v999
    %v1005 = vld.sshfl [vmem:[#allocation1] sm:$0xff pattern:$0x75316420]
    %v1006 = vld.sshfl [vmem:[#allocation1 + $0x8] sm:$0xff pattern:$0x75316420]
    %v1007 = vld.sshfl [vmem:[#allocation1 + $0x10] sm:$0xff pattern:$0x75316420]
    %1008 = vrot.lane.b32.xlu0 %v1005, 112
    %v1009 = vpop.permute.xlu0 %1008
    %1010 = vrot.lane.b32.xlu0 %v1006, 112
    %v1011 = vpop.permute.xlu0 %1010
    %1012 = vrot.lane.b32.xlu0 %v1007, 112
    %v1013 = vpop.permute.xlu0 %1012
    %v1014 = vsel %vm42, %v1009, %v1011
    %v1015 = vsel %vm42, %v1011, %v1013
    %v1017 = vsel %vm45, %v998, 0
    %v1019 = vsel %vm49, %v1014, 0
    %v1021 = vsel %vm49, %v1015, 0
    %1023 = vmatpush.msra.mxu0 0.0
    %1024 = vmatpush.msra.mxu0 0.0
    %1025 = vmatpush.msra.mxu0 0.0
    %1026 = vmatpush.msra.mxu0 0.0
    %1027 = vmatpush.msra.mxu0 0.0
    %1028 = vmatpush.msra.mxu0 0.0
    %1029 = vmatpush.msra.mxu0 0.0
    %1030 = vmatpush.msra.mxu0 0.0
    %1031 = vmatpush.msra.mxu0 0.0
    %1032 = vmatpush.msra.mxu0 0.0
    %1033 = vmatpush.msra.mxu0 0.0
    %1034 = vmatpush.msra.mxu0 0.0
    %1035 = vmatpush.msra.mxu0 0.0
    %1036 = vmatpush.msra.mxu0 0.0
    %1037 = vmatpush.msra.mxu0 0.0
    %1038 = vmatpush.msra.mxu0 %v1019
    %1039 = vmatmul.f32.gmra.mxu0 %v1017
    %v1040 = vpop.f32.mrf.mxu0
    %v1041 = vadd.f32 0.0, %v1040
    %1042 = vdwg.mxu0
    %1043 = vmatpush.msra.mxu0 0.0
    %1044 = vmatpush.msra.mxu0 0.0
    %1045 = vmatpush.msra.mxu0 0.0
    %1046 = vmatpush.msra.mxu0 0.0
    %1047 = vmatpush.msra.mxu0 0.0
    %1048 = vmatpush.msra.mxu0 0.0
    %1049 = vmatpush.msra.mxu0 0.0
    %1050 = vmatpush.msra.mxu0 0.0
    %1051 = vmatpush.msra.mxu0 0.0
    %1052 = vmatpush.msra.mxu0 0.0
    %1053 = vmatpush.msra.mxu0 0.0
    %1054 = vmatpush.msra.mxu0 0.0
    %1055 = vmatpush.msra.mxu0 0.0
    %1056 = vmatpush.msra.mxu0 0.0
    %1057 = vmatpush.msra.mxu0 0.0
    %1058 = vmatpush.msra.mxu0 %v1021
    %1059 = vmatmul.f32.gmra.mxu0 %v1017
    %v1060 = vpop.f32.mrf.mxu0
    %v1061 = vadd.f32 0.0, %v1060
    %1062 = vdwg.mxu0
    %1063 = vst [vmem:[#allocation1] ss:$2 sm:$0xff] %v994
    %v1064 = vld.sshfl [vmem:[#allocation1] sm:$0xff pattern:$0x75316420]
    %v1065 = vld.sshfl [vmem:[#allocation1 + $0x8] sm:$0xff pattern:$0x75316420]
    %v1067 = vsel %vm45, %v992, 0
    %v1069 = vsel %vm49, %v1064, 0
    %v1071 = vsel %vm49, %v1065, 0
    %1073 = vmatpush.msra.mxu0 0.0
    %1074 = vmatpush.msra.mxu0 0.0
    %1075 = vmatpush.msra.mxu0 0.0
    %1076 = vmatpush.msra.mxu0 0.0
    %1077 = vmatpush.msra.mxu0 0.0
    %1078 = vmatpush.msra.mxu0 0.0
    %1079 = vmatpush.msra.mxu0 0.0
    %1080 = vmatpush.msra.mxu0 0.0
    %1081 = vmatpush.msra.mxu0 0.0
    %1082 = vmatpush.msra.mxu0 0.0
    %1083 = vmatpush.msra.mxu0 0.0
    %1084 = vmatpush.msra.mxu0 0.0
    %1085 = vmatpush.msra.mxu0 0.0
    %1086 = vmatpush.msra.mxu0 0.0
    %1087 = vmatpush.msra.mxu0 0.0
    %1088 = vmatpush.msra.mxu0 %v1069
    %1089 = vmatmul.f32.gmra.mxu0 %v1067
    %v1090 = vpop.f32.mrf.mxu0
    %v1091 = vadd.f32 %v1041, %v1090
    %1092 = vdwg.mxu0
    %1093 = vmatpush.msra.mxu0 0.0
    %1094 = vmatpush.msra.mxu0 0.0
    %1095 = vmatpush.msra.mxu0 0.0
    %1096 = vmatpush.msra.mxu0 0.0
    %1097 = vmatpush.msra.mxu0 0.0
    %1098 = vmatpush.msra.mxu0 0.0
    %1099 = vmatpush.msra.mxu0 0.0
    %1100 = vmatpush.msra.mxu0 0.0
    %1101 = vmatpush.msra.mxu0 0.0
    %1102 = vmatpush.msra.mxu0 0.0
    %1103 = vmatpush.msra.mxu0 0.0
    %1104 = vmatpush.msra.mxu0 0.0
    %1105 = vmatpush.msra.mxu0 0.0
    %1106 = vmatpush.msra.mxu0 0.0
    %1107 = vmatpush.msra.mxu0 0.0
    %1108 = vmatpush.msra.mxu0 %v1071
    %1109 = vmatmul.f32.gmra.mxu0 %v1067
    %v1110 = vpop.f32.mrf.mxu0
    %v1111 = vadd.f32 %v1061, %v1110
    %1112 = vdwg.mxu0
    %v1113 = vld [vmem:[%s144] sm:$0x3]
    %v1114 = vld [vmem:[%s996] sm:$0xff]
    %v1115 = vld [vmem:[%s996 + $0x8] sm:$0xf]
    %1118 = vst [vmem:[#allocation1] ss:$2 sm:$0xff] %v1114
    %s1119 = scalar_lea.vmem [#allocation1], 16
    %1120 = vst [vmem:[%s1119] ss:$2 sm:$0xff] %v1115
    %v1121 = vld.sshfl [vmem:[#allocation1] sm:$0xff pattern:$0x75316420]
    %v1122 = vld.sshfl [vmem:[#allocation1 + $0x8] sm:$0xff pattern:$0x75316420]
    %v1123 = vld.sshfl [vmem:[#allocation1 + $0x10] sm:$0xff pattern:$0x75316420]
    %1124 = vrot.lane.b32.xlu0 %v1121, 112
    %v1125 = vpop.permute.xlu0 %1124
    %1126 = vrot.lane.b32.xlu0 %v1122, 112
    %v1127 = vpop.permute.xlu0 %1126
    %1128 = vrot.lane.b32.xlu0 %v1123, 112
    %v1129 = vpop.permute.xlu0 %1128
    %v1130 = vsel %vm42, %v1125, %v1127
    %v1131 = vsel %vm42, %v1127, %v1129
    %v1133 = vsel %vm45, %v1113, 0
    %v1135 = vsel %vm49, %v1130, 0
    %v1137 = vsel %vm49, %v1131, 0
    %1139 = vmatpush.msra.mxu0 0.0
    %1140 = vmatpush.msra.mxu0 0.0
    %1141 = vmatpush.msra.mxu0 0.0
    %1142 = vmatpush.msra.mxu0 0.0
    %1143 = vmatpush.msra.mxu0 0.0
    %1144 = vmatpush.msra.mxu0 0.0
    %1145 = vmatpush.msra.mxu0 0.0
    %1146 = vmatpush.msra.mxu0 0.0
    %1147 = vmatpush.msra.mxu0 0.0
    %1148 = vmatpush.msra.mxu0 0.0
    %1149 = vmatpush.msra.mxu0 0.0
    %1150 = vmatpush.msra.mxu0 0.0
    %1151 = vmatpush.msra.mxu0 0.0
    %1152 = vmatpush.msra.mxu0 0.0
    %1153 = vmatpush.msra.mxu0 0.0
    %1154 = vmatpush.msra.mxu0 %v1135
    %1155 = vmatmul.f32.gmra.mxu0 %v1133
    %v1156 = vpop.f32.mrf.mxu0
    %v1157 = vadd.f32 0.0, %v1156
    %1158 = vdwg.mxu0
    %1159 = vmatpush.msra.mxu0 0.0
    %1160 = vmatpush.msra.mxu0 0.0
    %1161 = vmatpush.msra.mxu0 0.0
    %1162 = vmatpush.msra.mxu0 0.0
    %1163 = vmatpush.msra.mxu0 0.0
    %1164 = vmatpush.msra.mxu0 0.0
    %1165 = vmatpush.msra.mxu0 0.0
    %1166 = vmatpush.msra.mxu0 0.0
    %1167 = vmatpush.msra.mxu0 0.0
    %1168 = vmatpush.msra.mxu0 0.0
    %1169 = vmatpush.msra.mxu0 0.0
    %1170 = vmatpush.msra.mxu0 0.0
    %1171 = vmatpush.msra.mxu0 0.0
    %1172 = vmatpush.msra.mxu0 0.0
    %1173 = vmatpush.msra.mxu0 0.0
    %1174 = vmatpush.msra.mxu0 %v1137
    %1175 = vmatmul.f32.gmra.mxu0 %v1133
    %v1176 = vpop.f32.mrf.mxu0
    %v1177 = vadd.f32 0.0, %v1176
    %1178 = vdwg.mxu0
    %1180 = vst [vmem:[#allocation1] ss:$2 sm:$0xff] %v997
    %v1181 = vld.sshfl [vmem:[#allocation1] sm:$0xff pattern:$0x75316420]
    %v1182 = vld.sshfl [vmem:[#allocation1 + $0x8] sm:$0xff pattern:$0x75316420]
    %v1184 = vsel %vm45, %v995, 0
    %v1186 = vsel %vm49, %v1181, 0
    %v1188 = vsel %vm49, %v1182, 0
    %1190 = vmatpush.msra.mxu0 0.0
    %1191 = vmatpush.msra.mxu0 0.0
    %1192 = vmatpush.msra.mxu0 0.0
    %1193 = vmatpush.msra.mxu0 0.0
    %1194 = vmatpush.msra.mxu0 0.0
    %1195 = vmatpush.msra.mxu0 0.0
    %1196 = vmatpush.msra.mxu0 0.0
    %1197 = vmatpush.msra.mxu0 0.0
    %1198 = vmatpush.msra.mxu0 0.0
    %1199 = vmatpush.msra.mxu0 0.0
    %1200 = vmatpush.msra.mxu0 0.0
    %1201 = vmatpush.msra.mxu0 0.0
    %1202 = vmatpush.msra.mxu0 0.0
    %1203 = vmatpush.msra.mxu0 0.0
    %1204 = vmatpush.msra.mxu0 0.0
    %1205 = vmatpush.msra.mxu0 %v1186
    %1206 = vmatmul.f32.gmra.mxu0 %v1184
    %v1207 = vpop.f32.mrf.mxu0
    %v1208 = vadd.f32 %v1157, %v1207
    %1209 = vdwg.mxu0
    %1210 = vmatpush.msra.mxu0 0.0
    %1211 = vmatpush.msra.mxu0 0.0
    %1212 = vmatpush.msra.mxu0 0.0
    %1213 = vmatpush.msra.mxu0 0.0
    %1214 = vmatpush.msra.mxu0 0.0
    %1215 = vmatpush.msra.mxu0 0.0
    %1216 = vmatpush.msra.mxu0 0.0
    %1217 = vmatpush.msra.mxu0 0.0
    %1218 = vmatpush.msra.mxu0 0.0
    %1219 = vmatpush.msra.mxu0 0.0
    %1220 = vmatpush.msra.mxu0 0.0
    %1221 = vmatpush.msra.mxu0 0.0
    %1222 = vmatpush.msra.mxu0 0.0
    %1223 = vmatpush.msra.mxu0 0.0
    %1224 = vmatpush.msra.mxu0 0.0
    %1225 = vmatpush.msra.mxu0 %v1188
    %1226 = vmatmul.f32.gmra.mxu0 %v1184
    %v1227 = vpop.f32.mrf.mxu0
    %v1228 = vadd.f32 %v1177, %v1227
    %1229 = vdwg.mxu0
    %v1230 = vld [vmem:[%s262] sm:$0x3]
    %v1231 = vld [vmem:[%s993] sm:$0xff]
    %v1232 = vld [vmem:[%s993 + $0x8] sm:$0xf]
    %1235 = vst [vmem:[#allocation1] ss:$2 sm:$0xff] %v1231
    %s1236 = scalar_lea.vmem [#allocation1], 16
    %1237 = vst [vmem:[%s1236] ss:$2 sm:$0xff] %v1232
    %v1238 = vld.sshfl [vmem:[#allocation1] sm:$0xff pattern:$0x75316420]
    %v1239 = vld.sshfl [vmem:[#allocation1 + $0x8] sm:$0xff pattern:$0x75316420]
    %v1240 = vld.sshfl [vmem:[#allocation1 + $0x10] sm:$0xff pattern:$0x75316420]
    %1241 = vrot.lane.b32.xlu0 %v1238, 96
    %v1242 = vpop.permute.xlu0 %1241
    %1243 = vrot.lane.b32.xlu0 %v1239, 96
    %v1244 = vpop.permute.xlu0 %1243
    %1245 = vrot.lane.b32.xlu0 %v1240, 96
    %v1246 = vpop.permute.xlu0 %1245
    %v1247 = vsel %vm280, %v1242, %v1244
    %v1248 = vsel %vm280, %v1244, %v1246
    %v1250 = vsel %vm45, %v1230, 0
    %v1252 = vsel %vm49, %v1247, 0
    %v1254 = vsel %vm49, %v1248, 0
    %1256 = vmatpush.msra.mxu0 0.0
    %1257 = vmatpush.msra.mxu0 0.0
    %1258 = vmatpush.msra.mxu0 0.0
    %1259 = vmatpush.msra.mxu0 0.0
    %1260 = vmatpush.msra.mxu0 0.0
    %1261 = vmatpush.msra.mxu0 0.0
    %1262 = vmatpush.msra.mxu0 0.0
    %1263 = vmatpush.msra.mxu0 0.0
    %1264 = vmatpush.msra.mxu0 0.0
    %1265 = vmatpush.msra.mxu0 0.0
    %1266 = vmatpush.msra.mxu0 0.0
    %1267 = vmatpush.msra.mxu0 0.0
    %1268 = vmatpush.msra.mxu0 0.0
    %1269 = vmatpush.msra.mxu0 0.0
    %1270 = vmatpush.msra.mxu0 0.0
    %1271 = vmatpush.msra.mxu0 %v1252
    %1272 = vmatmul.f32.gmra.mxu0 %v1250
    %v1273 = vpop.f32.mrf.mxu0
    %v1274 = vadd.f32 0.0, %v1273
    %1275 = vdwg.mxu0
    %1276 = vmatpush.msra.mxu0 0.0
    %1277 = vmatpush.msra.mxu0 0.0
    %1278 = vmatpush.msra.mxu0 0.0
    %1279 = vmatpush.msra.mxu0 0.0
    %1280 = vmatpush.msra.mxu0 0.0
    %1281 = vmatpush.msra.mxu0 0.0
    %1282 = vmatpush.msra.mxu0 0.0
    %1283 = vmatpush.msra.mxu0 0.0
    %1284 = vmatpush.msra.mxu0 0.0
    %1285 = vmatpush.msra.mxu0 0.0
    %1286 = vmatpush.msra.mxu0 0.0
    %1287 = vmatpush.msra.mxu0 0.0
    %1288 = vmatpush.msra.mxu0 0.0
    %1289 = vmatpush.msra.mxu0 0.0
    %1290 = vmatpush.msra.mxu0 0.0
    %1291 = vmatpush.msra.mxu0 %v1254
    %1292 = vmatmul.f32.gmra.mxu0 %v1250
    %v1293 = vpop.f32.mrf.mxu0
    %v1294 = vadd.f32 0.0, %v1293
    %1295 = vdwg.mxu0
    %v1296 = vadd.f32 %v1091, %v1274
    %v1297 = vadd.f32 %v1111, %v1294
    %v1298 = vld [vmem:[%s332] sm:$0x3]
    %v1299 = vld [vmem:[%s996] sm:$0xff]
    %v1300 = vld [vmem:[%s996 + $0x8] sm:$0xf]
    %1303 = vst [vmem:[#allocation1] ss:$2 sm:$0xff] %v1299
    %s1304 = scalar_lea.vmem [#allocation1], 16
    %1305 = vst [vmem:[%s1304] ss:$2 sm:$0xff] %v1300
    %v1306 = vld.sshfl [vmem:[#allocation1] sm:$0xff pattern:$0x75316420]
    %v1307 = vld.sshfl [vmem:[#allocation1 + $0x8] sm:$0xff pattern:$0x75316420]
    %v1308 = vld.sshfl [vmem:[#allocation1 + $0x10] sm:$0xff pattern:$0x75316420]
    %1309 = vrot.lane.b32.xlu0 %v1306, 96
    %v1310 = vpop.permute.xlu0 %1309
    %1311 = vrot.lane.b32.xlu0 %v1307, 96
    %v1312 = vpop.permute.xlu0 %1311
    %1313 = vrot.lane.b32.xlu0 %v1308, 96
    %v1314 = vpop.permute.xlu0 %1313
    %v1315 = vsel %vm280, %v1310, %v1312
    %v1316 = vsel %vm280, %v1312, %v1314
    %v1318 = vsel %vm45, %v1298, 0
    %v1320 = vsel %vm49, %v1315, 0
    %v1322 = vsel %vm49, %v1316, 0
    %1324 = vmatpush.msra.mxu0 0.0
    %1325 = vmatpush.msra.mxu0 0.0
    %1326 = vmatpush.msra.mxu0 0.0
    %1327 = vmatpush.msra.mxu0 0.0
    %1328 = vmatpush.msra.mxu0 0.0
    %1329 = vmatpush.msra.mxu0 0.0
    %1330 = vmatpush.msra.mxu0 0.0
    %1331 = vmatpush.msra.mxu0 0.0
    %1332 = vmatpush.msra.mxu0 0.0
    %1333 = vmatpush.msra.mxu0 0.0
    %1334 = vmatpush.msra.mxu0 0.0
    %1335 = vmatpush.msra.mxu0 0.0
    %1336 = vmatpush.msra.mxu0 0.0
    %1337 = vmatpush.msra.mxu0 0.0
    %1338 = vmatpush.msra.mxu0 0.0
    %1339 = vmatpush.msra.mxu0 %v1320
    %1340 = vmatmul.f32.gmra.mxu0 %v1318
    %v1341 = vpop.f32.mrf.mxu0
    %v1342 = vadd.f32 0.0, %v1341
    %1343 = vdwg.mxu0
    %1344 = vmatpush.msra.mxu0 0.0
    %1345 = vmatpush.msra.mxu0 0.0
    %1346 = vmatpush.msra.mxu0 0.0
    %1347 = vmatpush.msra.mxu0 0.0
    %1348 = vmatpush.msra.mxu0 0.0
    %1349 = vmatpush.msra.mxu0 0.0
    %1350 = vmatpush.msra.mxu0 0.0
    %1351 = vmatpush.msra.mxu0 0.0
    %1352 = vmatpush.msra.mxu0 0.0
    %1353 = vmatpush.msra.mxu0 0.0
    %1354 = vmatpush.msra.mxu0 0.0
    %1355 = vmatpush.msra.mxu0 0.0
    %1356 = vmatpush.msra.mxu0 0.0
    %1357 = vmatpush.msra.mxu0 0.0
    %1358 = vmatpush.msra.mxu0 0.0
    %1359 = vmatpush.msra.mxu0 %v1322
    %1360 = vmatmul.f32.gmra.mxu0 %v1318
    %v1361 = vpop.f32.mrf.mxu0
    %v1362 = vadd.f32 0.0, %v1361
    %1363 = vdwg.mxu0
    %v1364 = vadd.f32 %v1208, %v1342
    %v1365 = vadd.f32 %v1228, %v1362
    %v1366 = vld [vmem:[%s401] sm:$0x3]
    %v1367 = vld [vmem:[%s993] sm:$0xff]
    %v1368 = vld [vmem:[%s993 + $0x8] sm:$0xf]
    %1371 = vst [vmem:[#allocation1] ss:$2 sm:$0xff] %v1367
    %s1372 = scalar_lea.vmem [#allocation1], 16
    %1373 = vst [vmem:[%s1372] ss:$2 sm:$0xff] %v1368
    %v1374 = vld.sshfl [vmem:[#allocation1] sm:$0xff pattern:$0x75316420]
    %v1375 = vld.sshfl [vmem:[#allocation1 + $0x8] sm:$0xff pattern:$0x75316420]
    %v1376 = vld.sshfl [vmem:[#allocation1 + $0x10] sm:$0xff pattern:$0x75316420]
    %1377 = vrot.lane.b32.xlu0 %v1374, 80
    %v1378 = vpop.permute.xlu0 %1377
    %1379 = vrot.lane.b32.xlu0 %v1375, 80
    %v1380 = vpop.permute.xlu0 %1379
    %1381 = vrot.lane.b32.xlu0 %v1376, 80
    %v1382 = vpop.permute.xlu0 %1381
    %v1383 = vsel %vm419, %v1378, %v1380
    %v1384 = vsel %vm419, %v1380, %v1382
    %v1386 = vsel %vm45, %v1366, 0
    %v1388 = vsel %vm49, %v1383, 0
    %v1390 = vsel %vm49, %v1384, 0
    %1392 = vmatpush.msra.mxu0 0.0
    %1393 = vmatpush.msra.mxu0 0.0
    %1394 = vmatpush.msra.mxu0 0.0
    %1395 = vmatpush.msra.mxu0 0.0
    %1396 = vmatpush.msra.mxu0 0.0
    %1397 = vmatpush.msra.mxu0 0.0
    %1398 = vmatpush.msra.mxu0 0.0
    %1399 = vmatpush.msra.mxu0 0.0
    %1400 = vmatpush.msra.mxu0 0.0
    %1401 = vmatpush.msra.mxu0 0.0
    %1402 = vmatpush.msra.mxu0 0.0
    %1403 = vmatpush.msra.mxu0 0.0
    %1404 = vmatpush.msra.mxu0 0.0
    %1405 = vmatpush.msra.mxu0 0.0
    %1406 = vmatpush.msra.mxu0 0.0
    %1407 = vmatpush.msra.mxu0 %v1388
    %1408 = vmatmul.f32.gmra.mxu0 %v1386
    %v1409 = vpop.f32.mrf.mxu0
    %v1410 = vadd.f32 0.0, %v1409
    %1411 = vdwg.mxu0
    %1412 = vmatpush.msra.mxu0 0.0
    %1413 = vmatpush.msra.mxu0 0.0
    %1414 = vmatpush.msra.mxu0 0.0
    %1415 = vmatpush.msra.mxu0 0.0
    %1416 = vmatpush.msra.mxu0 0.0
    %1417 = vmatpush.msra.mxu0 0.0
    %1418 = vmatpush.msra.mxu0 0.0
    %1419 = vmatpush.msra.mxu0 0.0
    %1420 = vmatpush.msra.mxu0 0.0
    %1421 = vmatpush.msra.mxu0 0.0
    %1422 = vmatpush.msra.mxu0 0.0
    %1423 = vmatpush.msra.mxu0 0.0
    %1424 = vmatpush.msra.mxu0 0.0
    %1425 = vmatpush.msra.mxu0 0.0
    %1426 = vmatpush.msra.mxu0 0.0
    %1427 = vmatpush.msra.mxu0 %v1390
    %1428 = vmatmul.f32.gmra.mxu0 %v1386
    %v1429 = vpop.f32.mrf.mxu0
    %v1430 = vadd.f32 0.0, %v1429
    %1431 = vdwg.mxu0
    %v1432 = vadd.f32 %v1296, %v1410
    %v1433 = vadd.f32 %v1297, %v1430
    %v1434 = vld [vmem:[%s471] sm:$0x3]
    %v1435 = vld [vmem:[%s996] sm:$0xff]
    %v1436 = vld [vmem:[%s996 + $0x8] sm:$0xf]
    %1439 = vst [vmem:[#allocation1] ss:$2 sm:$0xff] %v1435
    %s1440 = scalar_lea.vmem [#allocation1], 16
    %1441 = vst [vmem:[%s1440] ss:$2 sm:$0xff] %v1436
    %v1442 = vld.sshfl [vmem:[#allocation1] sm:$0xff pattern:$0x75316420]
    %v1443 = vld.sshfl [vmem:[#allocation1 + $0x8] sm:$0xff pattern:$0x75316420]
    %v1444 = vld.sshfl [vmem:[#allocation1 + $0x10] sm:$0xff pattern:$0x75316420]
    %1445 = vrot.lane.b32.xlu0 %v1442, 80
    %v1446 = vpop.permute.xlu0 %1445
    %1447 = vrot.lane.b32.xlu0 %v1443, 80
    %v1448 = vpop.permute.xlu0 %1447
    %1449 = vrot.lane.b32.xlu0 %v1444, 80
    %v1450 = vpop.permute.xlu0 %1449
    %v1451 = vsel %vm419, %v1446, %v1448
    %v1452 = vsel %vm419, %v1448, %v1450
    %v1454 = vsel %vm45, %v1434, 0
    %v1456 = vsel %vm49, %v1451, 0
    %v1458 = vsel %vm49, %v1452, 0
    %1460 = vmatpush.msra.mxu0 0.0
    %1461 = vmatpush.msra.mxu0 0.0
    %1462 = vmatpush.msra.mxu0 0.0
    %1463 = vmatpush.msra.mxu0 0.0
    %1464 = vmatpush.msra.mxu0 0.0
    %1465 = vmatpush.msra.mxu0 0.0
    %1466 = vmatpush.msra.mxu0 0.0
    %1467 = vmatpush.msra.mxu0 0.0
    %1468 = vmatpush.msra.mxu0 0.0
    %1469 = vmatpush.msra.mxu0 0.0
    %1470 = vmatpush.msra.mxu0 0.0
    %1471 = vmatpush.msra.mxu0 0.0
    %1472 = vmatpush.msra.mxu0 0.0
    %1473 = vmatpush.msra.mxu0 0.0
    %1474 = vmatpush.msra.mxu0 0.0
    %1475 = vmatpush.msra.mxu0 %v1456
    %1476 = vmatmul.f32.gmra.mxu0 %v1454
    %v1477 = vpop.f32.mrf.mxu0
    %v1478 = vadd.f32 0.0, %v1477
    %1479 = vdwg.mxu0
    %1480 = vmatpush.msra.mxu0 0.0
    %1481 = vmatpush.msra.mxu0 0.0
    %1482 = vmatpush.msra.mxu0 0.0
    %1483 = vmatpush.msra.mxu0 0.0
    %1484 = vmatpush.msra.mxu0 0.0
    %1485 = vmatpush.msra.mxu0 0.0
    %1486 = vmatpush.msra.mxu0 0.0
    %1487 = vmatpush.msra.mxu0 0.0
    %1488 = vmatpush.msra.mxu0 0.0
    %1489 = vmatpush.msra.mxu0 0.0
    %1490 = vmatpush.msra.mxu0 0.0
    %1491 = vmatpush.msra.mxu0 0.0
    %1492 = vmatpush.msra.mxu0 0.0
    %1493 = vmatpush.msra.mxu0 0.0
    %1494 = vmatpush.msra.mxu0 0.0
    %1495 = vmatpush.msra.mxu0 %v1458
    %1496 = vmatmul.f32.gmra.mxu0 %v1454
    %v1497 = vpop.f32.mrf.mxu0
    %v1498 = vadd.f32 0.0, %v1497
    %1499 = vdwg.mxu0
    %v1500 = vadd.f32 %v1364, %v1478
    %v1501 = vadd.f32 %v1365, %v1498
    %v1502 = vld [vmem:[%s540] sm:$0x3]
    %v1503 = vld [vmem:[%s993] sm:$0xff]
    %v1504 = vld [vmem:[%s993 + $0x8] sm:$0xf]
    %1507 = vst [vmem:[#allocation1] ss:$2 sm:$0xff] %v1503
    %s1508 = scalar_lea.vmem [#allocation1], 16
    %1509 = vst [vmem:[%s1508] ss:$2 sm:$0xff] %v1504
    %v1510 = vld.sshfl [vmem:[#allocation1] sm:$0xff pattern:$0x75316420]
    %v1511 = vld.sshfl [vmem:[#allocation1 + $0x8] sm:$0xff pattern:$0x75316420]
    %v1512 = vld.sshfl [vmem:[#allocation1 + $0x10] sm:$0xff pattern:$0x75316420]
    %1513 = vrot.lane.b32.xlu0 %v1510, 64
    %v1514 = vpop.permute.xlu0 %1513
    %1515 = vrot.lane.b32.xlu0 %v1511, 64
    %v1516 = vpop.permute.xlu0 %1515
    %1517 = vrot.lane.b32.xlu0 %v1512, 64
    %v1518 = vpop.permute.xlu0 %1517
    %v1519 = vsel %vm558, %v1514, %v1516
    %v1520 = vsel %vm558, %v1516, %v1518
    %v1522 = vsel %vm45, %v1502, 0
    %v1524 = vsel %vm49, %v1519, 0
    %v1526 = vsel %vm49, %v1520, 0
    %1528 = vmatpush.msra.mxu0 0.0
    %1529 = vmatpush.msra.mxu0 0.0
    %1530 = vmatpush.msra.mxu0 0.0
    %1531 = vmatpush.msra.mxu0 0.0
    %1532 = vmatpush.msra.mxu0 0.0
    %1533 = vmatpush.msra.mxu0 0.0
    %1534 = vmatpush.msra.mxu0 0.0
    %1535 = vmatpush.msra.mxu0 0.0
    %1536 = vmatpush.msra.mxu0 0.0
    %1537 = vmatpush.msra.mxu0 0.0
    %1538 = vmatpush.msra.mxu0 0.0
    %1539 = vmatpush.msra.mxu0 0.0
    %1540 = vmatpush.msra.mxu0 0.0
    %1541 = vmatpush.msra.mxu0 0.0
    %1542 = vmatpush.msra.mxu0 0.0
    %1543 = vmatpush.msra.mxu0 %v1524
    %1544 = vmatmul.f32.gmra.mxu0 %v1522
    %v1545 = vpop.f32.mrf.mxu0
    %v1546 = vadd.f32 0.0, %v1545
    %1547 = vdwg.mxu0
    %1548 = vmatpush.msra.mxu0 0.0
    %1549 = vmatpush.msra.mxu0 0.0
    %1550 = vmatpush.msra.mxu0 0.0
    %1551 = vmatpush.msra.mxu0 0.0
    %1552 = vmatpush.msra.mxu0 0.0
    %1553 = vmatpush.msra.mxu0 0.0
    %1554 = vmatpush.msra.mxu0 0.0
    %1555 = vmatpush.msra.mxu0 0.0
    %1556 = vmatpush.msra.mxu0 0.0
    %1557 = vmatpush.msra.mxu0 0.0
    %1558 = vmatpush.msra.mxu0 0.0
    %1559 = vmatpush.msra.mxu0 0.0
    %1560 = vmatpush.msra.mxu0 0.0
    %1561 = vmatpush.msra.mxu0 0.0
    %1562 = vmatpush.msra.mxu0 0.0
    %1563 = vmatpush.msra.mxu0 %v1526
    %1564 = vmatmul.f32.gmra.mxu0 %v1522
    %v1565 = vpop.f32.mrf.mxu0
    %v1566 = vadd.f32 0.0, %v1565
    %1567 = vdwg.mxu0
    %v1568 = vadd.f32 %v1432, %v1546
    %v1569 = vadd.f32 %v1433, %v1566
    %v1570 = vld [vmem:[%s610] sm:$0x3]
    %v1571 = vld [vmem:[%s996] sm:$0xff]
    %v1572 = vld [vmem:[%s996 + $0x8] sm:$0xf]
    %1575 = vst [vmem:[#allocation1] ss:$2 sm:$0xff] %v1571
    %s1576 = scalar_lea.vmem [#allocation1], 16
    %1577 = vst [vmem:[%s1576] ss:$2 sm:$0xff] %v1572
    %v1578 = vld.sshfl [vmem:[#allocation1] sm:$0xff pattern:$0x75316420]
    %v1579 = vld.sshfl [vmem:[#allocation1 + $0x8] sm:$0xff pattern:$0x75316420]
    %v1580 = vld.sshfl [vmem:[#allocation1 + $0x10] sm:$0xff pattern:$0x75316420]
    %1581 = vrot.lane.b32.xlu0 %v1578, 64
    %v1582 = vpop.permute.xlu0 %1581
    %1583 = vrot.lane.b32.xlu0 %v1579, 64
    %v1584 = vpop.permute.xlu0 %1583
    %1585 = vrot.lane.b32.xlu0 %v1580, 64
    %v1586 = vpop.permute.xlu0 %1585
    %v1587 = vsel %vm558, %v1582, %v1584
    %v1588 = vsel %vm558, %v1584, %v1586
    %v1590 = vsel %vm45, %v1570, 0
    %v1592 = vsel %vm49, %v1587, 0
    %v1594 = vsel %vm49, %v1588, 0
    %1596 = vmatpush.msra.mxu0 0.0
    %1597 = vmatpush.msra.mxu0 0.0
    %1598 = vmatpush.msra.mxu0 0.0
    %1599 = vmatpush.msra.mxu0 0.0
    %1600 = vmatpush.msra.mxu0 0.0
    %1601 = vmatpush.msra.mxu0 0.0
    %1602 = vmatpush.msra.mxu0 0.0
    %1603 = vmatpush.msra.mxu0 0.0
    %1604 = vmatpush.msra.mxu0 0.0
    %1605 = vmatpush.msra.mxu0 0.0
    %1606 = vmatpush.msra.mxu0 0.0
    %1607 = vmatpush.msra.mxu0 0.0
    %1608 = vmatpush.msra.mxu0 0.0
    %1609 = vmatpush.msra.mxu0 0.0
    %1610 = vmatpush.msra.mxu0 0.0
    %1611 = vmatpush.msra.mxu0 %v1592
    %1612 = vmatmul.f32.gmra.mxu0 %v1590
    %v1613 = vpop.f32.mrf.mxu0
    %v1614 = vadd.f32 0.0, %v1613
    %1615 = vdwg.mxu0
    %1616 = vmatpush.msra.mxu0 0.0
    %1617 = vmatpush.msra.mxu0 0.0
    %1618 = vmatpush.msra.mxu0 0.0
    %1619 = vmatpush.msra.mxu0 0.0
    %1620 = vmatpush.msra.mxu0 0.0
    %1621 = vmatpush.msra.mxu0 0.0
    %1622 = vmatpush.msra.mxu0 0.0
    %1623 = vmatpush.msra.mxu0 0.0
    %1624 = vmatpush.msra.mxu0 0.0
    %1625 = vmatpush.msra.mxu0 0.0
    %1626 = vmatpush.msra.mxu0 0.0
    %1627 = vmatpush.msra.mxu0 0.0
    %1628 = vmatpush.msra.mxu0 0.0
    %1629 = vmatpush.msra.mxu0 0.0
    %1630 = vmatpush.msra.mxu0 0.0
    %1631 = vmatpush.msra.mxu0 %v1594
    %1632 = vmatmul.f32.gmra.mxu0 %v1590
    %v1633 = vpop.f32.mrf.mxu0
    %v1634 = vadd.f32 0.0, %v1633
    %1635 = vdwg.mxu0
    %v1636 = vadd.f32 %v1500, %v1614
    %v1637 = vadd.f32 %v1501, %v1634
    %v1638 = vld [vmem:[%s679] sm:$0x3]
    %v1639 = vld [vmem:[%s993] sm:$0xff]
    %v1640 = vld [vmem:[%s993 + $0x8] sm:$0xf]
    %1643 = vst [vmem:[#allocation1] ss:$2 sm:$0xff] %v1639
    %s1644 = scalar_lea.vmem [#allocation1], 16
    %1645 = vst [vmem:[%s1644] ss:$2 sm:$0xff] %v1640
    %v1646 = vld.sshfl [vmem:[#allocation1] sm:$0xff pattern:$0x75316420]
    %v1647 = vld.sshfl [vmem:[#allocation1 + $0x8] sm:$0xff pattern:$0x75316420]
    %v1648 = vld.sshfl [vmem:[#allocation1 + $0x10] sm:$0xff pattern:$0x75316420]
    %1649 = vrot.lane.b32.xlu0 %v1646, 48
    %v1650 = vpop.permute.xlu0 %1649
    %1651 = vrot.lane.b32.xlu0 %v1647, 48
    %v1652 = vpop.permute.xlu0 %1651
    %1653 = vrot.lane.b32.xlu0 %v1648, 48
    %v1654 = vpop.permute.xlu0 %1653
    %v1655 = vsel %vm697, %v1650, %v1652
    %v1656 = vsel %vm697, %v1652, %v1654
    %v1658 = vsel %vm45, %v1638, 0
    %v1660 = vsel %vm49, %v1655, 0
    %v1662 = vsel %vm49, %v1656, 0
    %1664 = vmatpush.msra.mxu0 0.0
    %1665 = vmatpush.msra.mxu0 0.0
    %1666 = vmatpush.msra.mxu0 0.0
    %1667 = vmatpush.msra.mxu0 0.0
    %1668 = vmatpush.msra.mxu0 0.0
    %1669 = vmatpush.msra.mxu0 0.0
    %1670 = vmatpush.msra.mxu0 0.0
    %1671 = vmatpush.msra.mxu0 0.0
    %1672 = vmatpush.msra.mxu0 0.0
    %1673 = vmatpush.msra.mxu0 0.0
    %1674 = vmatpush.msra.mxu0 0.0
    %1675 = vmatpush.msra.mxu0 0.0
    %1676 = vmatpush.msra.mxu0 0.0
    %1677 = vmatpush.msra.mxu0 0.0
    %1678 = vmatpush.msra.mxu0 0.0
    %1679 = vmatpush.msra.mxu0 %v1660
    %1680 = vmatmul.f32.gmra.mxu0 %v1658
    %v1681 = vpop.f32.mrf.mxu0
    %v1682 = vadd.f32 0.0, %v1681
    %1683 = vdwg.mxu0
    %1684 = vmatpush.msra.mxu0 0.0
    %1685 = vmatpush.msra.mxu0 0.0
    %1686 = vmatpush.msra.mxu0 0.0
    %1687 = vmatpush.msra.mxu0 0.0
    %1688 = vmatpush.msra.mxu0 0.0
    %1689 = vmatpush.msra.mxu0 0.0
    %1690 = vmatpush.msra.mxu0 0.0
    %1691 = vmatpush.msra.mxu0 0.0
    %1692 = vmatpush.msra.mxu0 0.0
    %1693 = vmatpush.msra.mxu0 0.0
    %1694 = vmatpush.msra.mxu0 0.0
    %1695 = vmatpush.msra.mxu0 0.0
    %1696 = vmatpush.msra.mxu0 0.0
    %1697 = vmatpush.msra.mxu0 0.0
    %1698 = vmatpush.msra.mxu0 0.0
    %1699 = vmatpush.msra.mxu0 %v1662
    %1700 = vmatmul.f32.gmra.mxu0 %v1658
    %v1701 = vpop.f32.mrf.mxu0
    %v1702 = vadd.f32 0.0, %v1701
    %1703 = vdwg.mxu0
    %v1704 = vadd.f32 %v1568, %v1682
    %v1705 = vadd.f32 %v1569, %v1702
    %v1706 = vld [vmem:[%s749] sm:$0x3]
    %v1707 = vld [vmem:[%s996] sm:$0xff]
    %v1708 = vld [vmem:[%s996 + $0x8] sm:$0xf]
    %1711 = vst [vmem:[#allocation1] ss:$2 sm:$0xff] %v1707
    %s1712 = scalar_lea.vmem [#allocation1], 16
    %1713 = vst [vmem:[%s1712] ss:$2 sm:$0xff] %v1708
    %v1714 = vld.sshfl [vmem:[#allocation1] sm:$0xff pattern:$0x75316420]
    %v1715 = vld.sshfl [vmem:[#allocation1 + $0x8] sm:$0xff pattern:$0x75316420]
    %v1716 = vld.sshfl [vmem:[#allocation1 + $0x10] sm:$0xff pattern:$0x75316420]
    %1717 = vrot.lane.b32.xlu0 %v1714, 48
    %v1718 = vpop.permute.xlu0 %1717
    %1719 = vrot.lane.b32.xlu0 %v1715, 48
    %v1720 = vpop.permute.xlu0 %1719
    %1721 = vrot.lane.b32.xlu0 %v1716, 48
    %v1722 = vpop.permute.xlu0 %1721
    %v1723 = vsel %vm697, %v1718, %v1720
    %v1724 = vsel %vm697, %v1720, %v1722
    %v1726 = vsel %vm45, %v1706, 0
    %v1728 = vsel %vm49, %v1723, 0
    %v1730 = vsel %vm49, %v1724, 0
    %1732 = vmatpush.msra.mxu0 0.0
    %1733 = vmatpush.msra.mxu0 0.0
    %1734 = vmatpush.msra.mxu0 0.0
    %1735 = vmatpush.msra.mxu0 0.0
    %1736 = vmatpush.msra.mxu0 0.0
    %1737 = vmatpush.msra.mxu0 0.0
    %1738 = vmatpush.msra.mxu0 0.0
    %1739 = vmatpush.msra.mxu0 0.0
    %1740 = vmatpush.msra.mxu0 0.0
    %1741 = vmatpush.msra.mxu0 0.0
    %1742 = vmatpush.msra.mxu0 0.0
    %1743 = vmatpush.msra.mxu0 0.0
    %1744 = vmatpush.msra.mxu0 0.0
    %1745 = vmatpush.msra.mxu0 0.0
    %1746 = vmatpush.msra.mxu0 0.0
    %1747 = vmatpush.msra.mxu0 %v1728
    %1748 = vmatmul.f32.gmra.mxu0 %v1726
    %v1749 = vpop.f32.mrf.mxu0
    %v1750 = vadd.f32 0.0, %v1749
    %1751 = vdwg.mxu0
    %1752 = vmatpush.msra.mxu0 0.0
    %1753 = vmatpush.msra.mxu0 0.0
    %1754 = vmatpush.msra.mxu0 0.0
    %1755 = vmatpush.msra.mxu0 0.0
    %1756 = vmatpush.msra.mxu0 0.0
    %1757 = vmatpush.msra.mxu0 0.0
    %1758 = vmatpush.msra.mxu0 0.0
    %1759 = vmatpush.msra.mxu0 0.0
    %1760 = vmatpush.msra.mxu0 0.0
    %1761 = vmatpush.msra.mxu0 0.0
    %1762 = vmatpush.msra.mxu0 0.0
    %1763 = vmatpush.msra.mxu0 0.0
    %1764 = vmatpush.msra.mxu0 0.0
    %1765 = vmatpush.msra.mxu0 0.0
    %1766 = vmatpush.msra.mxu0 0.0
    %1767 = vmatpush.msra.mxu0 %v1730
    %1768 = vmatmul.f32.gmra.mxu0 %v1726
    %v1769 = vpop.f32.mrf.mxu0
    %v1770 = vadd.f32 0.0, %v1769
    %1771 = vdwg.mxu0
    %v1772 = vadd.f32 %v1636, %v1750
    %v1773 = vadd.f32 %v1637, %v1770
    %v1774 = vld [vmem:[%s818] sm:$0x3]
    %v1775 = vld [vmem:[%s993] sm:$0xff]
    %v1776 = vld [vmem:[%s993 + $0x8] sm:$0xf]
    %1779 = vst [vmem:[#allocation1] ss:$2 sm:$0xff] %v1775
    %s1780 = scalar_lea.vmem [#allocation1], 16
    %1781 = vst [vmem:[%s1780] ss:$2 sm:$0xff] %v1776
    %v1782 = vld.sshfl [vmem:[#allocation1] sm:$0xff pattern:$0x75316420]
    %v1783 = vld.sshfl [vmem:[#allocation1 + $0x8] sm:$0xff pattern:$0x75316420]
    %v1784 = vld.sshfl [vmem:[#allocation1 + $0x10] sm:$0xff pattern:$0x75316420]
    %1785 = vrot.lane.b32.xlu0 %v1782, 32
    %v1786 = vpop.permute.xlu0 %1785
    %1787 = vrot.lane.b32.xlu0 %v1783, 32
    %v1788 = vpop.permute.xlu0 %1787
    %1789 = vrot.lane.b32.xlu0 %v1784, 32
    %v1790 = vpop.permute.xlu0 %1789
    %v1791 = vsel %vm836, %v1786, %v1788
    %v1792 = vsel %vm836, %v1788, %v1790
    %v1794 = vsel %vm45, %v1774, 0
    %v1796 = vsel %vm49, %v1791, 0
    %v1798 = vsel %vm49, %v1792, 0
    %1800 = vmatpush.msra.mxu0 0.0
    %1801 = vmatpush.msra.mxu0 0.0
    %1802 = vmatpush.msra.mxu0 0.0
    %1803 = vmatpush.msra.mxu0 0.0
    %1804 = vmatpush.msra.mxu0 0.0
    %1805 = vmatpush.msra.mxu0 0.0
    %1806 = vmatpush.msra.mxu0 0.0
    %1807 = vmatpush.msra.mxu0 0.0
    %1808 = vmatpush.msra.mxu0 0.0
    %1809 = vmatpush.msra.mxu0 0.0
    %1810 = vmatpush.msra.mxu0 0.0
    %1811 = vmatpush.msra.mxu0 0.0
    %1812 = vmatpush.msra.mxu0 0.0
    %1813 = vmatpush.msra.mxu0 0.0
    %1814 = vmatpush.msra.mxu0 0.0
    %1815 = vmatpush.msra.mxu0 %v1796
    %1816 = vmatmul.f32.gmra.mxu0 %v1794
    %v1817 = vpop.f32.mrf.mxu0
    %v1818 = vadd.f32 0.0, %v1817
    %1819 = vdwg.mxu0
    %1820 = vmatpush.msra.mxu0 0.0
    %1821 = vmatpush.msra.mxu0 0.0
    %1822 = vmatpush.msra.mxu0 0.0
    %1823 = vmatpush.msra.mxu0 0.0
    %1824 = vmatpush.msra.mxu0 0.0
    %1825 = vmatpush.msra.mxu0 0.0
    %1826 = vmatpush.msra.mxu0 0.0
    %1827 = vmatpush.msra.mxu0 0.0
    %1828 = vmatpush.msra.mxu0 0.0
    %1829 = vmatpush.msra.mxu0 0.0
    %1830 = vmatpush.msra.mxu0 0.0
    %1831 = vmatpush.msra.mxu0 0.0
    %1832 = vmatpush.msra.mxu0 0.0
    %1833 = vmatpush.msra.mxu0 0.0
    %1834 = vmatpush.msra.mxu0 0.0
    %1835 = vmatpush.msra.mxu0 %v1798
    %1836 = vmatmul.f32.gmra.mxu0 %v1794
    %v1837 = vpop.f32.mrf.mxu0
    %v1838 = vadd.f32 0.0, %v1837
    %1839 = vdwg.mxu0
    %v1840 = vadd.f32 %v1704, %v1818
    %v1841 = vadd.f32 %v1705, %v1838
    %v1842 = vld [vmem:[%s888] sm:$0x3]
    %v1843 = vld [vmem:[%s996] sm:$0xff]
    %v1844 = vld [vmem:[%s996 + $0x8] sm:$0xf]
    %1847 = vst [vmem:[#allocation1] ss:$2 sm:$0xff] %v1843
    %s1848 = scalar_lea.vmem [#allocation1], 16
    %1849 = vst [vmem:[%s1848] ss:$2 sm:$0xff] %v1844
    %v1850 = vld.sshfl [vmem:[#allocation1] sm:$0xff pattern:$0x75316420]
    %v1851 = vld.sshfl [vmem:[#allocation1 + $0x8] sm:$0xff pattern:$0x75316420]
    %v1852 = vld.sshfl [vmem:[#allocation1 + $0x10] sm:$0xff pattern:$0x75316420]
    %1853 = vrot.lane.b32.xlu0 %v1850, 32
    %v1854 = vpop.permute.xlu0 %1853
    %1855 = vrot.lane.b32.xlu0 %v1851, 32
    %v1856 = vpop.permute.xlu0 %1855
    %1857 = vrot.lane.b32.xlu0 %v1852, 32
    %v1858 = vpop.permute.xlu0 %1857
    %v1859 = vsel %vm836, %v1854, %v1856
    %v1860 = vsel %vm836, %v1856, %v1858
    %v1862 = vsel %vm45, %v1842, 0
    %v1864 = vsel %vm49, %v1859, 0
    %v1866 = vsel %vm49, %v1860, 0
    %1868 = vmatpush.msra.mxu0 0.0
    %1869 = vmatpush.msra.mxu0 0.0
    %1870 = vmatpush.msra.mxu0 0.0
    %1871 = vmatpush.msra.mxu0 0.0
    %1872 = vmatpush.msra.mxu0 0.0
    %1873 = vmatpush.msra.mxu0 0.0
    %1874 = vmatpush.msra.mxu0 0.0
    %1875 = vmatpush.msra.mxu0 0.0
    %1876 = vmatpush.msra.mxu0 0.0
    %1877 = vmatpush.msra.mxu0 0.0
    %1878 = vmatpush.msra.mxu0 0.0
    %1879 = vmatpush.msra.mxu0 0.0
    %1880 = vmatpush.msra.mxu0 0.0
    %1881 = vmatpush.msra.mxu0 0.0
    %1882 = vmatpush.msra.mxu0 0.0
    %1883 = vmatpush.msra.mxu0 %v1864
    %1884 = vmatmul.f32.gmra.mxu0 %v1862
    %v1885 = vpop.f32.mrf.mxu0
    %v1886 = vadd.f32 0.0, %v1885
    %1887 = vdwg.mxu0
    %1888 = vmatpush.msra.mxu0 0.0
    %1889 = vmatpush.msra.mxu0 0.0
    %1890 = vmatpush.msra.mxu0 0.0
    %1891 = vmatpush.msra.mxu0 0.0
    %1892 = vmatpush.msra.mxu0 0.0
    %1893 = vmatpush.msra.mxu0 0.0
    %1894 = vmatpush.msra.mxu0 0.0
    %1895 = vmatpush.msra.mxu0 0.0
    %1896 = vmatpush.msra.mxu0 0.0
    %1897 = vmatpush.msra.mxu0 0.0
    %1898 = vmatpush.msra.mxu0 0.0
    %1899 = vmatpush.msra.mxu0 0.0
    %1900 = vmatpush.msra.mxu0 0.0
    %1901 = vmatpush.msra.mxu0 0.0
    %1902 = vmatpush.msra.mxu0 0.0
    %1903 = vmatpush.msra.mxu0 %v1866
    %1904 = vmatmul.f32.gmra.mxu0 %v1862
    %v1905 = vpop.f32.mrf.mxu0
    %v1906 = vadd.f32 0.0, %v1905
    %1907 = vdwg.mxu0
    %v1908 = vadd.f32 %v1772, %v1886
    %v1909 = vadd.f32 %v1773, %v1906
    %v1912 = vrot.slane %v1908, 6
    %v1913 = vrot.slane %v1909, 6
    %v1916 = vsel %vm963, %v1840, %v1912
    %v1917 = vsel %vm963, %v1841, %v1913
    %v1918 = vld [vmem:[%s4] sm:$0xf]
    %1920 = vset.pattern.permute.xlu0 0
    %1921 = vperm.xlu0 %1920, %v1918
    %v1922 = vpop.permute.xlu0 %1921
    %v1924 = vadd.f32 %v1916, %v1922
    %v1925 = vadd.f32 %v1917, %v1922
    %v1926 = vsub.f32 0.0, %v1924
    %v1927 = vsub.f32 0.0, %v1925
    %v1928 = vmul.f32 %v1926, 1.442695
    %v1929 = vpow.pop %v1928
    %v1930 = vmul.f32 %v1927, 1.442695
    %v1931 = vpow.pop %v1930
    %v1932 = vadd.f32 %v1929, 1.0
    %v1933 = vadd.f32 %v1931, 1.0
    %v1934 = vrcp.pop %v1932
    %v1935 = vrcp.pop %v1933
    %v1936 = vmul.f32 %v1934, 2.0
    %v1937 = vmul.f32 %v1935, 2.0
    %v1940 = vrot.slane %v1937, 4
    %v1941 = vsel %vm49, %v1936, %v1940
    %s1943 = scalar_lea.vmem [#allocation2], 8
    %1944 = vst [vmem:[%s1943] sm:$0xff] %v1941
    // Predicated region
    $region22: #{tpu_custom_call.1} parent=1 // pred_check
      _
    $region23: #{tpu_custom_call.1} parent=1 // pred_check_branch
      %1946 = sbr.rel (0) target = $region25
    $region24: #{tpu_custom_call.1} parent=1 // pred_region
      %1948 = vsyncadd [#allocation3], 0
      %s1949 = sshll.u32 [#allocation2], 4
      %s1950 = int_to_ptr.vmem [resolvable:$true] %s1949
      %s1951 = sshll.u32 %s5, 4
      %s1952 = int_to_ptr.hbm [resolvable:$true] %s1951
      %1957 = dma.vmem_to_hbm [thread:$0]  %s1950, 256, %s1952, [#allocation3], 128, 128, 8
    $region25: #{tpu_custom_call.1} parent=1 // pred_fallthru
      _
    // Predicated region
    $region26: #{tpu_custom_call.1} parent=1 // pred_check
      _
    $region27: #{tpu_custom_call.1} parent=1 // pred_check_branch
      %1959 = sbr.rel (0) target = $region29
    $region28: #{tpu_custom_call.1} parent=1 // pred_region
      %1961 = dma.done [#allocation3], 256
    $region29: #{tpu_custom_call.1} parent=1 // pred_fallthru
      _
    %1962 = vsyncpa [#allocation3], 1

</llo_original>
